<compile_context>
chip_gen: v7x
topology: tpu7x:2x2x1
jax: 0.10.0
libtpu: 0.0.40
codegen_flags: <defaults>
</compile_context>

<pallas_src>
import functools

import jax
import jax.numpy as jnp
from jax.experimental import pallas as pl
from jax.experimental.pallas import tpu as pltpu


def _vmem_limit_bytes():
    """~48 MiB on v7x (64 MiB physical), ~112 MiB on v5e/v6e (128 MiB)."""
    try:
        cap = int(pltpu.get_tpu_info().vmem_capacity_bytes)
    except Exception:  # pragma: no cover - conservative fallback
        cap = 64 * 1024 * 1024
    return int(max(32 * 1024 * 1024, min(cap - 16 * 1024 * 1024,
                                         112 * 1024 * 1024)))


def _choose_tile_m(n128, f_pad, vmem_limit):
    """Largest node-row tile (multiple of 128, capped at 512) such that the
    double-buffered int8 adjacency tiles plus single-buffered residents fit."""
    d = 128
    resident = (2 * n128 * f_pad * 2          # x_out, x_in (bf16, 1 buffer)
                + n128 * d * 2                # z resident in call 2 (bf16)
                + (2 * f_pad + 2 * d) * d * 2 # w12, w3, wn (bf16)
                + 4 * 1024 * 1024)            # Mosaic scratch / semaphores slack
    per_row = (2 * 2 * n128                   # 2 int8 adjacency streams x 2 bufs
               + 4 * d * 2                    # in/out activation tiles (bf16)
               + 16)                          # row-scale tiles
    budget = max(vmem_limit - resident, per_row * 128)
    tm = (budget // per_row) // 128 * 128
    return int(max(128, min(512, tm)))


# --------------------------------------------------------------------------
# Kernel 1: conv1 (target_to_source) + conv2 (source_to_target), ReLU of the
# concat, conv3 feature transform (h @ W3).  Adjacency arrives as int8 0/1
# (TM, N) row tiles; normalization scales are applied in-kernel.
# --------------------------------------------------------------------------
def _conv12_kernel(e_ts_ref, e_st_ref, dout_r_ref, din_r_ref,
                   x_out_ref, x_in_ref, w12_ref, b12_ref, w3_ref, z_ref):
    f32, bf16 = jnp.float32, jnp.bfloat16
    dot = functools.partial(jnp.dot, preferred_element_type=f32)

    # int8 0/1 -> bf16 for the MXU (exact); column scales are already folded
    # into x_out / x_in in the wrapper, row scales applied on (TM, F) results.
    e_ts = e_ts_ref[...].astype(bf16)
    e_st = e_st_ref[...].astype(bf16)
    y1 = dout_r_ref[...] * dot(e_ts, x_out_ref[...])     # conv1 aggregation
    y2 = din_r_ref[...] * dot(e_st, x_in_ref[...])       # conv2 aggregation

    # h = relu(cat([y1, y2], -1) @ [W1; W2] + b)  -- single K=2*F_pad MXU pass.
    y = jnp.concatenate([y1, y2], axis=-1).astype(bf16)
    h = jnp.maximum(dot(y, w12_ref[...]) + b12_ref[...], 0.0)

    # conv3 feature transform; conv3's column scale (din^-1/2) is folded into
    # the stored z so call 2 streams only the raw 0/1 adjacency.
    z = din_r_ref[...] * dot(h.astype(bf16), w3_ref[...])
    z_ref[...] = z.astype(z_ref.dtype)


# --------------------------------------------------------------------------
# Kernel 2: conv3 aggregation (normalized E^T @ z + b3), ReLU, node_head1,
# ReLU.  Output hn is bf16 (halves writeback + call-3 read).
# --------------------------------------------------------------------------
def _conv3_node_kernel(e_st_ref, din_r_ref, z_ref, b3_ref, wn_ref, bn_ref,
                       hn_ref):
    f32, bf16 = jnp.float32, jnp.bfloat16
    dot = functools.partial(jnp.dot, preferred_element_type=f32)

    e_st = e_st_ref[...].astype(bf16)
    h3 = jnp.maximum(din_r_ref[...] * dot(e_st, z_ref[...]) + b3_ref[...], 0.0)
    hn = jnp.maximum(dot(h3.astype(bf16), wn_ref[...]) + bn_ref[...], 0.0)
    hn_ref[...] = hn.astype(hn_ref.dtype)


# --------------------------------------------------------------------------
# Kernel 3: global add / mean / max pooling accumulated across node tiles
# ("arbitrary" reduction axis, VMEM accumulators) + graph head as a VPU
# multiply + lane reduce.  Max pool is vectorized (no per-graph Python loop).
# --------------------------------------------------------------------------
def _pool_head_kernel(bmat_ref, bt3_ref, hn_ref, cnt_ref,
                      wgs_ref, wgm_ref, wgx_ref, bg_ref,
                      out_ref, s_acc, mx_acc):
    f32 = jnp.float32
    i = pl.program_id(0)

    @pl.when(i == 0)
    def _():
        s_acc[...] = jnp.zeros_like(s_acc)
        # hn >= 0 (post-ReLU), so 0 is a valid identity for the max.
        mx_acc[...] = jnp.zeros_like(mx_acc)
        out_ref[...] = jnp.zeros_like(out_ref)

    hn_bf = hn_ref[...]                                   # (TM, 128) bf16
    hn = hn_bf.astype(f32)

    # global_add_pool partial sums on the MXU: (G_pad, TM) @ (TM, 128).
    s_acc[...] += jnp.dot(bmat_ref[...], hn_bf, preferred_element_type=f32)

    # global_max_pool partial: multiplicative 0/1 mask is exact because hn>=0.
    # Intermediate is (TM, G_pad, 128) f32 -- fine while G_pad*TM*512B << VMEM.
    bt = bt3_ref[...].astype(f32)                         # (TM, G_pad, 1)
    masked = bt * hn[:, None, :]                          # (TM, G_pad, 128)
    mx_acc[...] = jnp.maximum(mx_acc[...], jnp.max(masked, axis=0))

    @pl.when(i == pl.num_programs(0) - 1)
    def _():
        s = s_acc[...]                                    # (G_pad, 128)
        cnt = jnp.maximum(cnt_ref[...], 1.0)              # guard padded graphs
        m = s / cnt                                       # exact mean pool
        # graph_head: cat([sum, mean, max]) @ Wg + bg  as VPU mul + lane sum.
        val = s * wgs_ref[...] + m * wgm_ref[...] + mx_acc[...] * wgx_ref[...]
        res = jnp.sum(val, axis=1, keepdims=True) + bg_ref[...]
        out_ref[...] = jnp.broadcast_to(res, out_ref.shape)


def init_params(key, num_features):
    def glorot(k, shape):
        fan_in, fan_out = shape
        lim = jnp.sqrt(6.0 / (fan_in + fan_out))
        return jax.random.uniform(k, shape, jnp.float32, -lim, lim)

    ks = jax.random.split(key, 7)
    return dict(
        w1=glorot(ks[0], (num_features, 32)), b1=jnp.zeros((1, 32), jnp.float32),
        w2=glorot(ks[1], (num_features, 32)), b2=jnp.zeros((1, 32), jnp.float32),
        w3=glorot(ks[2], (64, 64)), b3=jnp.zeros((1, 64), jnp.float32),
        wn=glorot(ks[3], (64, 32)),
        bn=jax.random.uniform(ks[4], (1, 32), jnp.float32, -0.1, 0.1),
        wg=glorot(ks[5], (96, 1)),
        bg=jax.random.uniform(ks[6], (1, 1), jnp.float32, -0.1, 0.1),
    )


def gcn_forward(x, edge_index, batch, params, num_graphs=None, tile_m=None):
    """num_graphs must be a static Python int.  tile_m=None derives the node
    row-tile height from the per-generation VMEM budget."""
    N, F = x.shape
    G = int(batch.max()) + 1 if num_graphs is None else int(num_graphs)

    f32, bf16, i8 = jnp.float32, jnp.bfloat16, jnp.int8
    D = 128  # lane-padded hidden width

    F_pad = max(128, ((F + 127) // 128) * 128)
    G_pad = max(8, ((G + 7) // 8) * 8)
    N128 = max(128, ((N + 127) // 128) * 128)

    vmem_limit = _vmem_limit_bytes()
    TM = int(tile_m) if tile_m is not None else _choose_tile_m(N128, F_pad,
                                                               vmem_limit)
    TM = min(TM, N128)
    N_pad = ((N128 + TM - 1) // TM) * TM
    n_tiles = N_pad // TM

    # ---- int8 0/1 adjacency (+ remaining self loops) built directly padded --
    src, dst = edge_index[0], edge_index[1]
    rng_n = jnp.arange(N, dtype=jnp.int32)
    e = (jnp.zeros((N_pad, N_pad), i8)
         .at[src, dst].set(1)
         .at[rng_n, rng_n].set(1))            # add_remaining_self_loops (w=1)
    e_t = e.T                                  # streamed for conv2 / conv3

    # ---- symmetric normalization scales (folded into x / z + row scales) ----
    dout = jnp.sum(e, axis=1, dtype=f32)       # out-degree incl. self loop
    din = jnp.sum(e, axis=0, dtype=f32)        # in-degree  incl. self loop
    dout_is = jnp.where(dout > 0, jax.lax.rsqrt(jnp.maximum(dout, 1.0)), 0.0)
    din_is = jnp.where(din > 0, jax.lax.rsqrt(jnp.maximum(din, 1.0)), 0.0)
    dout_r = dout_is.reshape(N_pad, 1)
    din_r = din_is.reshape(N_pad, 1)

    x_pad = jnp.zeros((N_pad, F_pad), f32).at[:N, :F].set(x.astype(f32))
    x_out = (dout_is[:, None] * x_pad).astype(bf16)   # conv1 column scale
    x_in = (din_is[:, None] * x_pad).astype(bf16)     # conv2 column scale

    # ---- graph assignment (one-hot) + static per-graph node counts ----------
    bmat = jnp.zeros((G_pad, N_pad), f32).at[batch, rng_n].set(1.0)
    bmat_bf = bmat.astype(bf16)
    bt3 = bmat.T.reshape(N_pad, G_pad, 1).astype(bf16)
    cnt = jnp.zeros((G_pad, 1), f32).at[batch, 0].add(1.0)

    # ---- lane-padded (128-wide) weights; MXU operands bf16, biases f32 ------
    w12 = (jnp.zeros((2 * F_pad, D), f32)
           .at[:F, 0:32].set(params["w1"])
           .at[F_pad:F_pad + F, 32:64].set(params["w2"])).astype(bf16)
    b12 = (jnp.zeros((1, D), f32).at[:, 0:32].set(params["b1"])
           .at[:, 32:64].set(params["b2"]))
    w3p = jnp.zeros((D, D), f32).at[0:64, 0:64].set(params["w3"]).astype(bf16)
    b3p = jnp.zeros((1, D), f32).at[:, 0:64].set(params["b3"])
    wnp = jnp.zeros((D, D), f32).at[0:64, 0:32].set(params["wn"]).astype(bf16)
    bnp = jnp.zeros((1, D), f32).at[:, 0:32].set(params["bn"])
    wgs = jnp.zeros((1, D), f32).at[0, 0:32].set(params["wg"][0:32, 0])
    wgm = jnp.zeros((1, D), f32).at[0, 0:32].set(params["wg"][32:64, 0])
    wgx = jnp.zeros((1, D), f32).at[0, 0:32].set(params["wg"][64:96, 0])
    bg = params["bg"].astype(f32)

    par = pltpu.CompilerParams(dimension_semantics=("parallel",),
                               vmem_limit_bytes=vmem_limit)
    arb = pltpu.CompilerParams(dimension_semantics=("arbitrary",),
                               vmem_limit_bytes=vmem_limit)

    def run(single_buffer):
        def spec(shape, index_map, invariant=False):
            if invariant and single_buffer and hasattr(pl, "Buffered"):
                try:
                    return pl.BlockSpec(shape, index_map,
                                        pipeline_mode=pl.Buffered(1))
                except TypeError:
                    pass
            return pl.BlockSpec(shape, index_map)

        def row(shape):   # streamed node-row tiles (double-buffered)
            return spec(shape, lambda i: (i,) + (0,) * (len(shape) - 1))

        def full(shape):  # grid-invariant residents (single-buffered)
            return spec(shape, lambda i: (0,) * len(shape), invariant=True)

        # ---- call 1: conv1 + conv2 + conv3 feature transform ----------------
        z = pl.pallas_call(
            _conv12_kernel,
            out_shape=jax.ShapeDtypeStruct((N_pad, D), bf16),
            grid=(n_tiles,),
            in_specs=[row((TM, N_pad)), row((TM, N_pad)),
                      row((TM, 1)), row((TM, 1)),
                      full((N_pad, F_pad)), full((N_pad, F_pad)),
                      full((2 * F_pad, D)), full((1, D)), full((D, D))],
            out_specs=pl.BlockSpec((TM, D), lambda i: (i, 0)),
            compiler_params=par,
        )(e, e_t, dout_r, din_r, x_out, x_in, w12, b12, w3p)

        # ---- call 2: conv3 aggregation + node_head1 --------------------------
        hn = pl.pallas_call(
            _conv3_node_kernel,
            out_shape=jax.ShapeDtypeStruct((N_pad, D), bf16),
            grid=(n_tiles,),
            in_specs=[row((TM, N_pad)), row((TM, 1)),
                      full((N_pad, D)), full((1, D)), full((D, D)),
                      full((1, D))],
            out_specs=pl.BlockSpec((TM, D), lambda i: (i, 0)),
            compiler_params=par,
        )(e_t, din_r, z, b3p, wnp, bnp)

        # ---- call 3: pooling (reduction over node tiles) + graph head --------
        pooled = pl.pallas_call(
            _pool_head_kernel,
            out_shape=jax.ShapeDtypeStruct((G_pad, D), f32),
            grid=(n_tiles,),
            in_specs=[spec((G_pad, TM), lambda i: (0, i)),
                      row((TM, G_pad, 1)),
                      row((TM, D)),
                      full((G_pad, 1)), full((1, D)), full((1, D)),
                      full((1, D)), full((1, 1))],
            out_specs=pl.BlockSpec((G_pad, D), lambda i: (0, 0)),
            scratch_shapes=[pltpu.VMEM((G_pad, D), f32),
                            pltpu.VMEM((G_pad, D), f32)],
            compiler_params=arb,
        )(bmat_bf, bt3, hn, cnt, wgs, wgm, wgx, bg)

        return jax.block_until_ready(pooled)

    try:
        pooled = run(True)
    except Exception:  # pragma: no cover - JAX without BlockSpec pipeline_mode
        pooled = run(False)

    return pooled[:G, 0:1]


if __name__ == "__main__":
    key = jax.random.PRNGKey(0)
    kx, kp = jax.random.split(key)

    num_features = 16
    N = 8  # nodes (two graphs of 4 nodes each)
    x = jax.random.normal(kx, (N, num_features), jnp.float32)
    # Small DAG edges (src row, dst row), torch_geometric edge_index convention.
    edge_index = jnp.array([[0, 0, 1, 2, 4, 4, 5, 6],
                            [1, 2, 3, 3, 5, 6, 7, 7]], dtype=jnp.int32)
    batch = jnp.array([0, 0, 0, 0, 1, 1, 1, 1], dtype=jnp.int32)

    params = init_params(kp, num_features)
    out = gcn_forward(x, edge_index, batch, params, num_graphs=2)
    jax.block_until_ready(out)
    assert out.shape == (2, 1) and out.dtype == jnp.float32
    print("KERNEL_OK")
</pallas_src>

<mosaic_0001>
module attributes {stable_mosaic.version = 11 : i64} {
  func.func @_conv12_kernel(%arg0: i32, %arg1: memref<128x128xi8, #tpu.memory_space<vmem>>, %arg2: memref<128x128xi8, #tpu.memory_space<vmem>>, %arg3: memref<128x1xf32, #tpu.memory_space<vmem>>, %arg4: memref<128x1xf32, #tpu.memory_space<vmem>>, %arg5: memref<128x128xbf16, #tpu.memory_space<vmem>>, %arg6: memref<128x128xbf16, #tpu.memory_space<vmem>>, %arg7: memref<256x128xbf16, #tpu.memory_space<vmem>>, %arg8: memref<1x128xf32, #tpu.memory_space<vmem>>, %arg9: memref<128x128xbf16, #tpu.memory_space<vmem>>, %arg10: memref<128x128xbf16, #tpu.memory_space<vmem>>) attributes {dimension_semantics = [#tpu.dimension_semantics<parallel>], iteration_bounds = array<i64: 1>, scalar_prefetch = 0 : i64, scratch_operands = 0 : i64, tpu.core_type = #tpu.core_type<tc>, window_params = [{transform_indices = @transform_0, window_bounds = array<i64: 128, 128>}, {transform_indices = @transform_1, window_bounds = array<i64: 128, 128>}, {transform_indices = @transform_2, window_bounds = array<i64: 128, 1>}, {transform_indices = @transform_3, window_bounds = array<i64: 128, 1>}, {pipeline_mode = #tpu.pipeline_mode<synchronous>, transform_indices = @transform_4, window_bounds = array<i64: 128, 128>}, {pipeline_mode = #tpu.pipeline_mode<synchronous>, transform_indices = @transform_5, window_bounds = array<i64: 128, 128>}, {pipeline_mode = #tpu.pipeline_mode<synchronous>, transform_indices = @transform_6, window_bounds = array<i64: 256, 128>}, {pipeline_mode = #tpu.pipeline_mode<synchronous>, transform_indices = @transform_7, window_bounds = array<i64: 1, 128>}, {pipeline_mode = #tpu.pipeline_mode<synchronous>, transform_indices = @transform_8, window_bounds = array<i64: 128, 128>}, {transform_indices = @transform_9, window_bounds = array<i64: 128, 128>}]} {
    %c0 = arith.constant 0 : index
    %c0_0 = arith.constant 0 : index
    %0 = vector.load %arg1[%c0, %c0_0] : memref<128x128xi8, #tpu.memory_space<vmem>>, vector<128x128xi8>
    %1 = arith.sitofp %0 : vector<128x128xi8> to vector<128x128xbf16>
    %c0_1 = arith.constant 0 : index
    %c0_2 = arith.constant 0 : index
    %2 = vector.load %arg2[%c0_1, %c0_2] : memref<128x128xi8, #tpu.memory_space<vmem>>, vector<128x128xi8>
    %3 = arith.sitofp %2 : vector<128x128xi8> to vector<128x128xbf16>
    %c0_3 = arith.constant 0 : index
    %c0_4 = arith.constant 0 : index
    %4 = vector.load %arg3[%c0_3, %c0_4] : memref<128x1xf32, #tpu.memory_space<vmem>>, vector<128x1xf32>
    %c0_5 = arith.constant 0 : index
    %c0_6 = arith.constant 0 : index
    %5 = vector.load %arg5[%c0_5, %c0_6] : memref<128x128xbf16, #tpu.memory_space<vmem>>, vector<128x128xbf16>
    %cst = arith.constant dense<0.000000e+00> : vector<128x128xf32>
    %6 = tpu.matmul %1, %5, %cst {dimension_numbers = #tpu.dot_dimension_numbers<[1], [0], [0], [1], [0, 0, 1, 1], [], []>} : vector<128x128xbf16>, vector<128x128xbf16>, vector<128x128xf32> -> vector<128x128xf32>
    %7 = vector.broadcast %4 : vector<128x1xf32> to vector<128x128xf32>
    %8 = arith.mulf %7, %6 : vector<128x128xf32>
    %c0_7 = arith.constant 0 : index
    %c0_8 = arith.constant 0 : index
    %9 = vector.load %arg4[%c0_7, %c0_8] : memref<128x1xf32, #tpu.memory_space<vmem>>, vector<128x1xf32>
    %c0_9 = arith.constant 0 : index
    %c0_10 = arith.constant 0 : index
    %10 = vector.load %arg6[%c0_9, %c0_10] : memref<128x128xbf16, #tpu.memory_space<vmem>>, vector<128x128xbf16>
    %cst_11 = arith.constant dense<0.000000e+00> : vector<128x128xf32>
    %11 = tpu.matmul %3, %10, %cst_11 {dimension_numbers = #tpu.dot_dimension_numbers<[1], [0], [0], [1], [0, 0, 1, 1], [], []>} : vector<128x128xbf16>, vector<128x128xbf16>, vector<128x128xf32> -> vector<128x128xf32>
    %12 = vector.broadcast %9 : vector<128x1xf32> to vector<128x128xf32>
    %13 = arith.mulf %12, %11 : vector<128x128xf32>
    %14 = tpu.concatenate %8, %13 in 1 : vector<128x128xf32>, vector<128x128xf32> -> vector<128x256xf32>
    %15 = arith.truncf %14 : vector<128x256xf32> to vector<128x256xbf16>
    %c0_12 = arith.constant 0 : index
    %c0_13 = arith.constant 0 : index
    %16 = vector.load %arg7[%c0_12, %c0_13] : memref<256x128xbf16, #tpu.memory_space<vmem>>, vector<256x128xbf16>
    %cst_14 = arith.constant dense<0.000000e+00> : vector<128x128xf32>
    %17 = tpu.matmul %15, %16, %cst_14 {dimension_numbers = #tpu.dot_dimension_numbers<[1], [0], [0], [1], [0, 0, 1, 1], [], []>} : vector<128x256xbf16>, vector<256x128xbf16>, vector<128x128xf32> -> vector<128x128xf32>
    %c0_15 = arith.constant 0 : index
    %c0_16 = arith.constant 0 : index
    %18 = vector.load %arg8[%c0_15, %c0_16] : memref<1x128xf32, #tpu.memory_space<vmem>>, vector<1x128xf32>
    %19 = vector.broadcast %18 : vector<1x128xf32> to vector<128x128xf32>
    %20 = arith.addf %17, %19 : vector<128x128xf32>
    %cst_17 = arith.constant 0.000000e+00 : f32
    %21 = vector.broadcast %cst_17 : f32 to vector<128x128xf32>
    %22 = arith.maximumf %20, %21 : vector<128x128xf32>
    %c0_18 = arith.constant 0 : index
    %c0_19 = arith.constant 0 : index
    %23 = vector.load %arg4[%c0_18, %c0_19] : memref<128x1xf32, #tpu.memory_space<vmem>>, vector<128x1xf32>
    %24 = arith.truncf %22 : vector<128x128xf32> to vector<128x128xbf16>
    %c0_20 = arith.constant 0 : index
    %c0_21 = arith.constant 0 : index
    %25 = vector.load %arg9[%c0_20, %c0_21] : memref<128x128xbf16, #tpu.memory_space<vmem>>, vector<128x128xbf16>
    %cst_22 = arith.constant dense<0.000000e+00> : vector<128x128xf32>
    %26 = tpu.matmul %24, %25, %cst_22 {dimension_numbers = #tpu.dot_dimension_numbers<[1], [0], [0], [1], [0, 0, 1, 1], [], []>} : vector<128x128xbf16>, vector<128x128xbf16>, vector<128x128xf32> -> vector<128x128xf32>
    %27 = vector.broadcast %23 : vector<128x1xf32> to vector<128x128xf32>
    %28 = arith.mulf %27, %26 : vector<128x128xf32>
    %29 = arith.truncf %28 : vector<128x128xf32> to vector<128x128xbf16>
    %c0_23 = arith.constant 0 : index
    %c0_24 = arith.constant 0 : index
    %30 = vector.load %arg10[%c0_23, %c0_24] : memref<128x128xbf16, #tpu.memory_space<vmem>>, vector<128x128xbf16>
    tpu.vector_store %arg10[%c0_23, %c0_24], %29 {strides = array<i32>} : memref<128x128xbf16, #tpu.memory_space<vmem>>, vector<128x128xbf16>,
    return
  }
  func.func @transform_0(%arg0: i32) -> (i32, i32) {
    %c0_i32 = arith.constant 0 : i32
    %c0_i32_0 = arith.constant 0 : i32
    return %arg0, %c0_i32 : i32, i32
  }
  func.func @transform_1(%arg0: i32) -> (i32, i32) {
    %c0_i32 = arith.constant 0 : i32
    %c0_i32_0 = arith.constant 0 : i32
    return %arg0, %c0_i32 : i32, i32
  }
  func.func @transform_2(%arg0: i32) -> (i32, i32) {
    %c0_i32 = arith.constant 0 : i32
    %c0_i32_0 = arith.constant 0 : i32
    return %arg0, %c0_i32 : i32, i32
  }
  func.func @transform_3(%arg0: i32) -> (i32, i32) {
    %c0_i32 = arith.constant 0 : i32
    %c0_i32_0 = arith.constant 0 : i32
    return %arg0, %c0_i32 : i32, i32
  }
  func.func @transform_4(%arg0: i32) -> (i32, i32) {
    %c0_i32 = arith.constant 0 : i32
    %c0_i32_0 = arith.constant 0 : i32
    %c0_i32_1 = arith.constant 0 : i32
    return %c0_i32, %c0_i32_0 : i32, i32
  }
  func.func @transform_5(%arg0: i32) -> (i32, i32) {
    %c0_i32 = arith.constant 0 : i32
    %c0_i32_0 = arith.constant 0 : i32
    %c0_i32_1 = arith.constant 0 : i32
    return %c0_i32, %c0_i32_0 : i32, i32
  }
  func.func @transform_6(%arg0: i32) -> (i32, i32) {
    %c0_i32 = arith.constant 0 : i32
    %c0_i32_0 = arith.constant 0 : i32
    %c0_i32_1 = arith.constant 0 : i32
    return %c0_i32, %c0_i32_0 : i32, i32
  }
  func.func @transform_7(%arg0: i32) -> (i32, i32) {
    %c0_i32 = arith.constant 0 : i32
    %c0_i32_0 = arith.constant 0 : i32
    %c0_i32_1 = arith.constant 0 : i32
    return %c0_i32, %c0_i32_0 : i32, i32
  }
  func.func @transform_8(%arg0: i32) -> (i32, i32) {
    %c0_i32 = arith.constant 0 : i32
    %c0_i32_0 = arith.constant 0 : i32
    %c0_i32_1 = arith.constant 0 : i32
    return %c0_i32, %c0_i32_0 : i32, i32
  }
  func.func @transform_9(%arg0: i32) -> (i32, i32) {
    %c0_i32 = arith.constant 0 : i32
    %c0_i32_0 = arith.constant 0 : i32
    return %arg0, %c0_i32 : i32, i32
  }
}

module attributes {stable_mosaic.version = 11 : i64} {
  func.func @_conv12_kernel(%arg0: i32, %arg1: memref<128x128xi8, #tpu.memory_space<vmem>>, %arg2: memref<128x128xi8, #tpu.memory_space<vmem>>, %arg3: memref<128x1xf32, #tpu.memory_space<vmem>>, %arg4: memref<128x1xf32, #tpu.memory_space<vmem>>, %arg5: memref<128x128xbf16, #tpu.memory_space<vmem>>, %arg6: memref<128x128xbf16, #tpu.memory_space<vmem>>, %arg7: memref<256x128xbf16, #tpu.memory_space<vmem>>, %arg8: memref<1x128xf32, #tpu.memory_space<vmem>>, %arg9: memref<128x128xbf16, #tpu.memory_space<vmem>>, %arg10: memref<128x128xbf16, #tpu.memory_space<vmem>>) attributes {dimension_semantics = [#tpu.dimension_semantics<parallel>], iteration_bounds = array<i64: 1>, scalar_prefetch = 0 : i64, scratch_operands = 0 : i64, tpu.core_type = #tpu.core_type<tc>, window_params = [{transform_indices = @transform_0, window_bounds = array<i64: 128, 128>}, {transform_indices = @transform_1, window_bounds = array<i64: 128, 128>}, {transform_indices = @transform_2, window_bounds = array<i64: 128, 1>}, {transform_indices = @transform_3, window_bounds = array<i64: 128, 1>}, {pipeline_mode = #tpu.pipeline_mode<synchronous>, transform_indices = @transform_4, window_bounds = array<i64: 128, 128>}, {pipeline_mode = #tpu.pipeline_mode<synchronous>, transform_indices = @transform_5, window_bounds = array<i64: 128, 128>}, {pipeline_mode = #tpu.pipeline_mode<synchronous>, transform_indices = @transform_6, window_bounds = array<i64: 256, 128>}, {pipeline_mode = #tpu.pipeline_mode<synchronous>, transform_indices = @transform_7, window_bounds = array<i64: 1, 128>}, {pipeline_mode = #tpu.pipeline_mode<synchronous>, transform_indices = @transform_8, window_bounds = array<i64: 128, 128>}, {transform_indices = @transform_9, window_bounds = array<i64: 128, 128>}]} {
    %c0 = arith.constant 0 : index
    %c0_0 = arith.constant 0 : index
    %0 = vector.load %arg1[%c0, %c0_0] : memref<128x128xi8, #tpu.memory_space<vmem>>, vector<128x128xi8>
    %1 = arith.sitofp %0 : vector<128x128xi8> to vector<128x128xbf16>
    %c0_1 = arith.constant 0 : index
    %c0_2 = arith.constant 0 : index
    %2 = vector.load %arg2[%c0_1, %c0_2] : memref<128x128xi8, #tpu.memory_space<vmem>>, vector<128x128xi8>
    %3 = arith.sitofp %2 : vector<128x128xi8> to vector<128x128xbf16>
    %c0_3 = arith.constant 0 : index
    %c0_4 = arith.constant 0 : index
    %4 = vector.load %arg3[%c0_3, %c0_4] : memref<128x1xf32, #tpu.memory_space<vmem>>, vector<128x1xf32>
    %c0_5 = arith.constant 0 : index
    %c0_6 = arith.constant 0 : index
    %5 = vector.load %arg5[%c0_5, %c0_6] : memref<128x128xbf16, #tpu.memory_space<vmem>>, vector<128x128xbf16>
    %cst = arith.constant dense<0.000000e+00> : vector<128x128xf32>
    %6 = tpu.matmul %1, %5, %cst {dimension_numbers = #tpu.dot_dimension_numbers<[1], [0], [0], [1], [0, 0, 1, 1], [], []>} : vector<128x128xbf16>, vector<128x128xbf16>, vector<128x128xf32> -> vector<128x128xf32>
    %7 = vector.broadcast %4 : vector<128x1xf32> to vector<128x128xf32>
    %8 = arith.mulf %7, %6 : vector<128x128xf32>
    %c0_7 = arith.constant 0 : index
    %c0_8 = arith.constant 0 : index
    %9 = vector.load %arg4[%c0_7, %c0_8] : memref<128x1xf32, #tpu.memory_space<vmem>>, vector<128x1xf32>
    %c0_9 = arith.constant 0 : index
    %c0_10 = arith.constant 0 : index
    %10 = vector.load %arg6[%c0_9, %c0_10] : memref<128x128xbf16, #tpu.memory_space<vmem>>, vector<128x128xbf16>
    %cst_11 = arith.constant dense<0.000000e+00> : vector<128x128xf32>
    %11 = tpu.matmul %3, %10, %cst_11 {dimension_numbers = #tpu.dot_dimension_numbers<[1], [0], [0], [1], [0, 0, 1, 1], [], []>} : vector<128x128xbf16>, vector<128x128xbf16>, vector<128x128xf32> -> vector<128x128xf32>
    %12 = vector.broadcast %9 : vector<128x1xf32> to vector<128x128xf32>
    %13 = arith.mulf %12, %11 : vector<128x128xf32>
    %14 = tpu.concatenate %8, %13 in 1 : vector<128x128xf32>, vector<128x128xf32> -> vector<128x256xf32>
    %15 = arith.truncf %14 : vector<128x256xf32> to vector<128x256xbf16>
    %c0_12 = arith.constant 0 : index
    %c0_13 = arith.constant 0 : index
    %16 = vector.load %arg7[%c0_12, %c0_13] : memref<256x128xbf16, #tpu.memory_space<vmem>>, vector<256x128xbf16>
    %cst_14 = arith.constant dense<0.000000e+00> : vector<128x128xf32>
    %17 = tpu.matmul %15, %16, %cst_14 {dimension_numbers = #tpu.dot_dimension_numbers<[1], [0], [0], [1], [0, 0, 1, 1], [], []>} : vector<128x256xbf16>, vector<256x128xbf16>, vector<128x128xf32> -> vector<128x128xf32>
    %c0_15 = arith.constant 0 : index
    %c0_16 = arith.constant 0 : index
    %18 = vector.load %arg8[%c0_15, %c0_16] : memref<1x128xf32, #tpu.memory_space<vmem>>, vector<1x128xf32>
    %19 = vector.broadcast %18 : vector<1x128xf32> to vector<128x128xf32>
    %20 = arith.addf %17, %19 : vector<128x128xf32>
    %cst_17 = arith.constant 0.000000e+00 : f32
    %21 = vector.broadcast %cst_17 : f32 to vector<128x128xf32>
    %22 = arith.maximumf %20, %21 : vector<128x128xf32>
    %c0_18 = arith.constant 0 : index
    %c0_19 = arith.constant 0 : index
    %23 = vector.load %arg4[%c0_18, %c0_19] : memref<128x1xf32, #tpu.memory_space<vmem>>, vector<128x1xf32>
    %24 = arith.truncf %22 : vector<128x128xf32> to vector<128x128xbf16>
    %c0_20 = arith.constant 0 : index
    %c0_21 = arith.constant 0 : index
    %25 = vector.load %arg9[%c0_20, %c0_21] : memref<128x128xbf16, #tpu.memory_space<vmem>>, vector<128x128xbf16>
    %cst_22 = arith.constant dense<0.000000e+00> : vector<128x128xf32>
    %26 = tpu.matmul %24, %25, %cst_22 {dimension_numbers = #tpu.dot_dimension_numbers<[1], [0], [0], [1], [0, 0, 1, 1], [], []>} : vector<128x128xbf16>, vector<128x128xbf16>, vector<128x128xf32> -> vector<128x128xf32>
    %27 = vector.broadcast %23 : vector<128x1xf32> to vector<128x128xf32>
    %28 = arith.mulf %27, %26 : vector<128x128xf32>
    %29 = arith.truncf %28 : vector<128x128xf32> to vector<128x128xbf16>
    %c0_23 = arith.constant 0 : index
    %c0_24 = arith.constant 0 : index
    %30 = vector.load %arg10[%c0_23, %c0_24] : memref<128x128xbf16, #tpu.memory_space<vmem>>, vector<128x128xbf16>
    tpu.vector_store %arg10[%c0_23, %c0_24], %29 {strides = array<i32>} : memref<128x128xbf16, #tpu.memory_space<vmem>>, vector<128x128xbf16>,
    return
  }
  func.func @transform_0(%arg0: i32) -> (i32, i32) {
    %c0_i32 = arith.constant 0 : i32
    %c0_i32_0 = arith.constant 0 : i32
    return %arg0, %c0_i32 : i32, i32
  }
  func.func @transform_1(%arg0: i32) -> (i32, i32) {
    %c0_i32 = arith.constant 0 : i32
    %c0_i32_0 = arith.constant 0 : i32
    return %arg0, %c0_i32 : i32, i32
  }
  func.func @transform_2(%arg0: i32) -> (i32, i32) {
    %c0_i32 = arith.constant 0 : i32
    %c0_i32_0 = arith.constant 0 : i32
    return %arg0, %c0_i32 : i32, i32
  }
  func.func @transform_3(%arg0: i32) -> (i32, i32) {
    %c0_i32 = arith.constant 0 : i32
    %c0_i32_0 = arith.constant 0 : i32
    return %arg0, %c0_i32 : i32, i32
  }
  func.func @transform_4(%arg0: i32) -> (i32, i32) {
    %c0_i32 = arith.constant 0 : i32
    %c0_i32_0 = arith.constant 0 : i32
    %c0_i32_1 = arith.constant 0 : i32
    return %c0_i32, %c0_i32_0 : i32, i32
  }
  func.func @transform_5(%arg0: i32) -> (i32, i32) {
    %c0_i32 = arith.constant 0 : i32
    %c0_i32_0 = arith.constant 0 : i32
    %c0_i32_1 = arith.constant 0 : i32
    return %c0_i32, %c0_i32_0 : i32, i32
  }
  func.func @transform_6(%arg0: i32) -> (i32, i32) {
    %c0_i32 = arith.constant 0 : i32
    %c0_i32_0 = arith.constant 0 : i32
    %c0_i32_1 = arith.constant 0 : i32
    return %c0_i32, %c0_i32_0 : i32, i32
  }
  func.func @transform_7(%arg0: i32) -> (i32, i32) {
    %c0_i32 = arith.constant 0 : i32
    %c0_i32_0 = arith.constant 0 : i32
    %c0_i32_1 = arith.constant 0 : i32
    return %c0_i32, %c0_i32_0 : i32, i32
  }
  func.func @transform_8(%arg0: i32) -> (i32, i32) {
    %c0_i32 = arith.constant 0 : i32
    %c0_i32_0 = arith.constant 0 : i32
    %c0_i32_1 = arith.constant 0 : i32
    return %c0_i32, %c0_i32_0 : i32, i32
  }
  func.func @transform_9(%arg0: i32) -> (i32, i32) {
    %c0_i32 = arith.constant 0 : i32
    %c0_i32_0 = arith.constant 0 : i32
    return %arg0, %c0_i32 : i32, i32
  }
}

</mosaic_0001>

<llo_original>
// kernel: tpu_custom_call.1
$region0: #{tpu_custom_call.1}
  #allocation0 [shape = 'u32[]', space=smem, size = 0x4, offset = 0x4, fixed_abs, tag = 'smem constant byte address 0x4 - core index']
  #allocation1 [shape = 'u32[144,128]{1,0:T(1,128)}', space=vmem, size = 0x12000, scoped, tag = 'internal scratch']
  %s0 = inlined_call_operand.hbm [shape: s8[128,128], index: 0, kind: input, shape index: {}]
  %s1 = inlined_call_operand.hbm [shape: s8[128,128], index: 1, kind: input, shape index: {}]
  %s2 = inlined_call_operand.vmem [shape: f32[128,1], index: 2, kind: input, shape index: {}]
  %s3 = inlined_call_operand.vmem [shape: f32[128,1], index: 3, kind: input, shape index: {}]
  %s4 = inlined_call_operand.vmem [shape: bf16[128,128], index: 4, kind: input, shape index: {}]
  %s5 = inlined_call_operand.vmem [shape: bf16[128,128], index: 5, kind: input, shape index: {}]
  %s6 = inlined_call_operand.vmem [shape: bf16[256,128], index: 6, kind: input, shape index: {}]
  %s7 = inlined_call_operand.vmem [shape: f32[1,128], index: 7, kind: input, shape index: {}]
  %s8 = inlined_call_operand.hbm [shape: bf16[128,128], index: 8, kind: input, shape index: {}]
  %s9 = inlined_call_operand.hbm [shape: bf16[128,128], index: 9, kind: output, shape index: {}]
  %s10 = sld [smem:[#allocation0]]
  $region58: #{tpu_custom_call.1} parent=0
    _
  %s12 = ssub.s32 1, %s10
  %s13 = scalar_select 0, %s12, %s10
  $region1: #{tpu_custom_call.1} parent=0
    #allocation2 [shape = 'u8[16384]{0}', space=vmem, size = 0x4000, scoped, tag = 'input window, operand 0, single buffered']
    #allocation3 [shape = 's32[1]{0}', space=sflag, size = 0x4, scoped, tag = 'scoped memory for tpu_custom_call.1']
    #allocation4 [shape = 's32[1]{0}', space=sflag, size = 0x4, scoped, tag = 'scoped memory for tpu_custom_call.1']
    #allocation5 [shape = 'u8[16384]{0}', space=vmem, size = 0x4000, scoped, tag = 'input window, operand 1, single buffered']
    #allocation6 [shape = 's32[1]{0}', space=sflag, size = 0x4, scoped, tag = 'scoped memory for tpu_custom_call.1']
    #allocation7 [shape = 'u8[32768]{0}', space=vmem, size = 0x8000, scoped, tag = 'input window, operand 8, single buffered']
    #allocation8 [shape = 'u8[32768]{0}', space=vmem, size = 0x8000, scoped, tag = 'output window, operand 0, single buffered']
    %14 = vsyncpa [#allocation3], 0
    %15 = vsyncpa [#allocation6], 0
    %16 = vsyncpa [#allocation4], 0
    // Predicated region
    $region2: #{tpu_custom_call.1} parent=1 // pred_check
      _
    $region3: #{tpu_custom_call.1} parent=1 // pred_check_branch
      %18 = sbr.rel (0) target = $region5
    $region4: #{tpu_custom_call.1} parent=1 // pred_region
      %s20 = ssub.s32 512, 512
      %21 = vsyncadd [#allocation3], %s20
      %s22 = sshll.u32 [#allocation2], 4
      %s23 = int_to_ptr.vmem [resolvable:$true] %s22
      %28 = dma.hbm_to_vmem [thread:$0]  %s0, 512, %s23, [#allocation3], 128, 128, 8
    $region5: #{tpu_custom_call.1} parent=1 // pred_fallthru
      _
    // Predicated region
    $region6: #{tpu_custom_call.1} parent=1 // pred_check
      _
    $region7: #{tpu_custom_call.1} parent=1 // pred_check_branch
      %30 = sbr.rel (0) target = $region9
    $region8: #{tpu_custom_call.1} parent=1 // pred_region
      %s32 = ssub.s32 512, 512
      %33 = vsyncadd [#allocation6], %s32
      %s34 = sshll.u32 [#allocation5], 4
      %s35 = int_to_ptr.vmem [resolvable:$true] %s34
      %40 = dma.hbm_to_vmem [thread:$0]  %s1, 512, %s35, [#allocation6], 128, 128, 8
    $region9: #{tpu_custom_call.1} parent=1 // pred_fallthru
      _
    // Predicated region
    $region10: #{tpu_custom_call.1} parent=1 // pred_check
      _
    $region11: #{tpu_custom_call.1} parent=1 // pred_check_branch
      %42 = sbr.rel (0) target = $region13
    $region12: #{tpu_custom_call.1} parent=1 // pred_region
      _
    $region13: #{tpu_custom_call.1} parent=1 // pred_fallthru
      _
    // Predicated region
    $region14: #{tpu_custom_call.1} parent=1 // pred_check
      _
    $region15: #{tpu_custom_call.1} parent=1 // pred_check_branch
      %44 = sbr.rel (0) target = $region17
    $region16: #{tpu_custom_call.1} parent=1 // pred_region
      _
    $region17: #{tpu_custom_call.1} parent=1 // pred_fallthru
      _
    // Predicated region
    $region18: #{tpu_custom_call.1} parent=1 // pred_check
      _
    $region19: #{tpu_custom_call.1} parent=1 // pred_check_branch
      %46 = sbr.rel (0) target = $region21
    $region20: #{tpu_custom_call.1} parent=1 // pred_region
      _
    $region21: #{tpu_custom_call.1} parent=1 // pred_fallthru
      _
    // Predicated region
    $region22: #{tpu_custom_call.1} parent=1 // pred_check
      _
    $region23: #{tpu_custom_call.1} parent=1 // pred_check_branch
      %48 = sbr.rel (0) target = $region25
    $region24: #{tpu_custom_call.1} parent=1 // pred_region
      _
    $region25: #{tpu_custom_call.1} parent=1 // pred_fallthru
      _
    // Predicated region
    $region26: #{tpu_custom_call.1} parent=1 // pred_check
      _
    $region27: #{tpu_custom_call.1} parent=1 // pred_check_branch
      %50 = sbr.rel (0) target = $region29
    $region28: #{tpu_custom_call.1} parent=1 // pred_region
      _
    $region29: #{tpu_custom_call.1} parent=1 // pred_fallthru
      _
    // Predicated region
    $region30: #{tpu_custom_call.1} parent=1 // pred_check
      _
    $region31: #{tpu_custom_call.1} parent=1 // pred_check_branch
      %52 = sbr.rel (0) target = $region33
    $region32: #{tpu_custom_call.1} parent=1 // pred_region
      _
    $region33: #{tpu_custom_call.1} parent=1 // pred_fallthru
      _
    // Predicated region
    $region34: #{tpu_custom_call.1} parent=1 // pred_check
      _
    $region35: #{tpu_custom_call.1} parent=1 // pred_check_branch
      %54 = sbr.rel (0) target = $region37
    $region36: #{tpu_custom_call.1} parent=1 // pred_region
      %s56 = ssub.s32 1024, 1024
      %57 = vsyncadd [#allocation6], %s56
      %s58 = sshll.u32 [#allocation7], 4
      %s59 = int_to_ptr.vmem [resolvable:$true] %s58
      %64 = dma.hbm_to_vmem [thread:$0]  %s8, 1024, %s59, [#allocation6], 64, 64, 4
    $region37: #{tpu_custom_call.1} parent=1 // pred_fallthru
      _
    // Predicated region
    $region38: #{tpu_custom_call.1} parent=1 // pred_check
      _
    $region39: #{tpu_custom_call.1} parent=1 // pred_check_branch
      %66 = sbr.rel (0) target = $region41
    $region40: #{tpu_custom_call.1} parent=1 // pred_region
      %67 = dma.done [#allocation3], 512
    $region41: #{tpu_custom_call.1} parent=1 // pred_fallthru
      _
    // Predicated region
    $region42: #{tpu_custom_call.1} parent=1 // pred_check
      _
    $region43: #{tpu_custom_call.1} parent=1 // pred_check_branch
      %69 = sbr.rel (0) target = $region45
    $region44: #{tpu_custom_call.1} parent=1 // pred_region
      %70 = dma.done [#allocation6], 512
    $region45: #{tpu_custom_call.1} parent=1 // pred_fallthru
      _
    // Predicated region
    $region46: #{tpu_custom_call.1} parent=1 // pred_check
      _
    $region47: #{tpu_custom_call.1} parent=1 // pred_check_branch
      %72 = sbr.rel (0) target = $region49
    $region48: #{tpu_custom_call.1} parent=1 // pred_region
      %73 = dma.done [#allocation6], 1024
    $region49: #{tpu_custom_call.1} parent=1 // pred_fallthru
      _
    %v75 = vld [vmem:[#allocation2] sm:$0xff]
    %v76 = vld [vmem:[#allocation2 + $0x8] sm:$0xff]
    %v77 = vld [vmem:[#allocation2 + $0x10] sm:$0xff]
    %v78 = vld [vmem:[#allocation2 + $0x18] sm:$0xff]
    %v79 = vunpack.c.l.s8.bf16 %v75
    %v80 = vunpack.c.h.s8.bf16 %v75
    %v81 = vunpack.c.l.s8.bf16 %v76
    %v82 = vunpack.c.h.s8.bf16 %v76
    %v83 = vunpack.c.l.s8.bf16 %v77
    %v84 = vunpack.c.h.s8.bf16 %v77
    %v85 = vunpack.c.l.s8.bf16 %v78
    %v86 = vunpack.c.h.s8.bf16 %v78
    %v87 = vld [vmem:[#allocation5] sm:$0xff]
    %v88 = vld [vmem:[#allocation5 + $0x8] sm:$0xff]
    %v89 = vld [vmem:[#allocation5 + $0x10] sm:$0xff]
    %v90 = vld [vmem:[#allocation5 + $0x18] sm:$0xff]
    %v91 = vunpack.c.l.s8.bf16 %v87
    %v92 = vunpack.c.h.s8.bf16 %v87
    %v93 = vunpack.c.l.s8.bf16 %v88
    %v94 = vunpack.c.h.s8.bf16 %v88
    %v95 = vunpack.c.l.s8.bf16 %v89
    %v96 = vunpack.c.h.s8.bf16 %v89
    %v97 = vunpack.c.l.s8.bf16 %v90
    %v98 = vunpack.c.h.s8.bf16 %v90
    %v99 = vld [vmem:[%s2] sm:$0xff]
    %v100 = vld [vmem:[%s2 + $0x8] sm:$0xff]
    %v101 = vld [vmem:[%s2 + $0x10] sm:$0xff]
    %v102 = vld [vmem:[%s2 + $0x18] sm:$0xff]
    %v103 = vld [vmem:[%s2 + $0x20] sm:$0xff]
    %v104 = vld [vmem:[%s2 + $0x28] sm:$0xff]
    %v105 = vld [vmem:[%s2 + $0x30] sm:$0xff]
    %v106 = vld [vmem:[%s2 + $0x38] sm:$0xff]
    %v107 = vld [vmem:[%s2 + $0x40] sm:$0xff]
    %v108 = vld [vmem:[%s2 + $0x48] sm:$0xff]
    %v109 = vld [vmem:[%s2 + $0x50] sm:$0xff]
    %v110 = vld [vmem:[%s2 + $0x58] sm:$0xff]
    %v111 = vld [vmem:[%s2 + $0x60] sm:$0xff]
    %v112 = vld [vmem:[%s2 + $0x68] sm:$0xff]
    %v113 = vld [vmem:[%s2 + $0x70] sm:$0xff]
    %v114 = vld [vmem:[%s2 + $0x78] sm:$0xff]
    %v115 = vld [vmem:[%s4] sm:$0xf]
    %v116 = vld [vmem:[%s4 + $0x4] sm:$0xf]
    %v117 = vld [vmem:[%s4 + $0x8] sm:$0xf]
    %v118 = vld [vmem:[%s4 + $0xc] sm:$0xf]
    %v119 = vld [vmem:[%s4 + $0x10] sm:$0xf]
    %v120 = vld [vmem:[%s4 + $0x14] sm:$0xf]
    %v121 = vld [vmem:[%s4 + $0x18] sm:$0xf]
    %v122 = vld [vmem:[%s4 + $0x1c] sm:$0xf]
    %v123 = vld [vmem:[%s4 + $0x20] sm:$0xf]
    %v124 = vld [vmem:[%s4 + $0x24] sm:$0xf]
    %v125 = vld [vmem:[%s4 + $0x28] sm:$0xf]
    %v126 = vld [vmem:[%s4 + $0x2c] sm:$0xf]
    %v127 = vld [vmem:[%s4 + $0x30] sm:$0xf]
    %v128 = vld [vmem:[%s4 + $0x34] sm:$0xf]
    %v129 = vld [vmem:[%s4 + $0x38] sm:$0xf]
    %v130 = vld [vmem:[%s4 + $0x3c] sm:$0xf]
    %v147 = vunpack.c.l.b16 %v115
    %v148 = vunpack.c.l.b16 %v116
    %v149 = vunpack.c.l.b16 %v117
    %v150 = vunpack.c.l.b16 %v118
    %v151 = vunpack.c.l.b16 %v119
    %v152 = vunpack.c.l.b16 %v120
    %v153 = vunpack.c.l.b16 %v121
    %v154 = vunpack.c.l.b16 %v122
    %v155 = vunpack.c.l.b16 %v123
    %v156 = vunpack.c.l.b16 %v124
    %v157 = vunpack.c.l.b16 %v125
    %v158 = vunpack.c.l.b16 %v126
    %v159 = vunpack.c.l.b16 %v127
    %v160 = vunpack.c.l.b16 %v128
    %v161 = vunpack.c.l.b16 %v129
    %v162 = vunpack.c.l.b16 %v130
    %v163 = vpack.c.b16 %v148, %v147
    %v164 = vpack.c.b16 %v150, %v149
    %v165 = vpack.c.b16 %v152, %v151
    %v166 = vpack.c.b16 %v154, %v153
    %v167 = vpack.c.b16 %v156, %v155
    %v168 = vpack.c.b16 %v158, %v157
    %v169 = vpack.c.b16 %v160, %v159
    %v170 = vpack.c.b16 %v162, %v161
    %179 = vmatprep.subr.bf16.mxu0 0
    %180 = vmatpush1.bf16.msra.mxu0 %v163
    %181 = vmatprep.subr.bf16.mxu0 0
    %182 = vmatpush1.bf16.msra.mxu0 %v164
    %183 = vmatprep.subr.bf16.mxu0 0
    %184 = vmatpush1.bf16.msra.mxu0 %v165
    %185 = vmatprep.subr.bf16.mxu0 0
    %186 = vmatpush1.bf16.msra.mxu0 %v166
    %187 = vmatprep.subr.bf16.mxu0 0
    %188 = vmatpush1.bf16.msra.mxu0 %v167
    %189 = vmatprep.subr.bf16.mxu0 0
    %190 = vmatpush1.bf16.msra.mxu0 %v168
    %191 = vmatprep.subr.bf16.mxu0 0
    %192 = vmatpush1.bf16.msra.mxu0 %v169
    %193 = vmatprep.subr.bf16.mxu0 0
    %194 = vmatpush1.bf16.msra.mxu0 %v170
    %195 = vmatprep.subr.bf16.mxu0 0
    %196 = vmatpush1.bf16.msra.mxu0 0
    %197 = vmatprep.subr.bf16.mxu0 0
    %198 = vmatpush1.bf16.msra.mxu0 0
    %199 = vmatprep.subr.bf16.mxu0 0
    %200 = vmatpush1.bf16.msra.mxu0 0
    %201 = vmatprep.subr.bf16.mxu0 0
    %202 = vmatpush1.bf16.msra.mxu0 0
    %203 = vmatprep.subr.bf16.mxu0 0
    %204 = vmatpush1.bf16.msra.mxu0 0
    %205 = vmatprep.subr.bf16.mxu0 0
    %206 = vmatpush1.bf16.msra.mxu0 0
    %207 = vmatprep.subr.bf16.mxu0 0
    %208 = vmatpush1.bf16.msra.mxu0 0
    %209 = vmatprep.subr.bf16.mxu0 0
    %210 = vmatpush1.bf16.msra.mxu0 0
    %211 = vmatprep.mubr.bf16.mxu0 0
    %212 = vmatmul.mubr.bf16.gmra.mrb[0].mxu0 %v79
    %v213 = vpop.f32.mrb[0].mxu0
    %v214 = vadd.f32 0.0, %v213
    %v215 = vpop.f32.mrb[0].mxu0
    %v216 = vpop.f32.mrb[0].mxu0
    %v217 = vadd.f32 0.0, %v216
    %v218 = vpop.f32.mrb[0].mxu0
    %219 = vmatprep.mubr.bf16.mxu0 0
    %220 = vmatmul.mubr.bf16.gmra.mrb[0].mxu0 %v80
    %v221 = vpop.f32.mrb[0].mxu0
    %v222 = vadd.f32 0.0, %v221
    %v223 = vpop.f32.mrb[0].mxu0
    %v224 = vpop.f32.mrb[0].mxu0
    %v225 = vadd.f32 0.0, %v224
    %v226 = vpop.f32.mrb[0].mxu0
    %227 = vmatprep.mubr.bf16.mxu0 0
    %228 = vmatmul.mubr.bf16.gmra.mrb[0].mxu0 %v81
    %v229 = vpop.f32.mrb[0].mxu0
    %v230 = vadd.f32 0.0, %v229
    %v231 = vpop.f32.mrb[0].mxu0
    %v232 = vpop.f32.mrb[0].mxu0
    %v233 = vadd.f32 0.0, %v232
    %v234 = vpop.f32.mrb[0].mxu0
    %235 = vmatprep.mubr.bf16.mxu0 0
    %236 = vmatmul.mubr.bf16.gmra.mrb[0].mxu0 %v82
    %v237 = vpop.f32.mrb[0].mxu0
    %v238 = vadd.f32 0.0, %v237
    %v239 = vpop.f32.mrb[0].mxu0
    %v240 = vpop.f32.mrb[0].mxu0
    %v241 = vadd.f32 0.0, %v240
    %v242 = vpop.f32.mrb[0].mxu0
    %243 = vmatprep.mubr.bf16.mxu0 0
    %244 = vmatmul.mubr.bf16.gmra.mrb[0].mxu0 %v83
    %v245 = vpop.f32.mrb[0].mxu0
    %v246 = vadd.f32 0.0, %v245
    %v247 = vpop.f32.mrb[0].mxu0
    %v248 = vpop.f32.mrb[0].mxu0
    %v249 = vadd.f32 0.0, %v248
    %v250 = vpop.f32.mrb[0].mxu0
    %251 = vmatprep.mubr.bf16.mxu0 0
    %252 = vmatmul.mubr.bf16.gmra.mrb[0].mxu0 %v84
    %v253 = vpop.f32.mrb[0].mxu0
    %v254 = vadd.f32 0.0, %v253
    %v255 = vpop.f32.mrb[0].mxu0
    %v256 = vpop.f32.mrb[0].mxu0
    %v257 = vadd.f32 0.0, %v256
    %v258 = vpop.f32.mrb[0].mxu0
    %259 = vmatprep.mubr.bf16.mxu0 0
    %260 = vmatmul.mubr.bf16.gmra.mrb[0].mxu0 %v85
    %v261 = vpop.f32.mrb[0].mxu0
    %v262 = vadd.f32 0.0, %v261
    %v263 = vpop.f32.mrb[0].mxu0
    %v264 = vpop.f32.mrb[0].mxu0
    %v265 = vadd.f32 0.0, %v264
    %v266 = vpop.f32.mrb[0].mxu0
    %267 = vmatprep.mubr.bf16.mxu0 0
    %268 = vmatmul.mubr.bf16.gmra.mrb[0].mxu0 %v86
    %v269 = vpop.f32.mrb[0].mxu0
    %v270 = vadd.f32 0.0, %v269
    %v271 = vpop.f32.mrb[0].mxu0
    %v272 = vpop.f32.mrb[0].mxu0
    %v273 = vadd.f32 0.0, %v272
    %v274 = vpop.f32.mrb[0].mxu0
    %275 = vdwg.mxu0
    %277 = vset.pattern.permute.xlu0 0
    %278 = vperm.xlu0 %277, %v99
    %v279 = vpop.permute.xlu0 %278
    %282 = vset.pattern.permute.xlu0 0
    %283 = vperm.xlu0 %282, %v100
    %v284 = vpop.permute.xlu0 %283
    %287 = vset.pattern.permute.xlu0 0
    %288 = vperm.xlu0 %287, %v101
    %v289 = vpop.permute.xlu0 %288
    %292 = vset.pattern.permute.xlu0 0
    %293 = vperm.xlu0 %292, %v102
    %v294 = vpop.permute.xlu0 %293
    %297 = vset.pattern.permute.xlu0 0
    %298 = vperm.xlu0 %297, %v103
    %v299 = vpop.permute.xlu0 %298
    %302 = vset.pattern.permute.xlu0 0
    %303 = vperm.xlu0 %302, %v104
    %v304 = vpop.permute.xlu0 %303
    %307 = vset.pattern.permute.xlu0 0
    %308 = vperm.xlu0 %307, %v105
    %v309 = vpop.permute.xlu0 %308
    %312 = vset.pattern.permute.xlu0 0
    %313 = vperm.xlu0 %312, %v106
    %v314 = vpop.permute.xlu0 %313
    %317 = vset.pattern.permute.xlu0 0
    %318 = vperm.xlu0 %317, %v107
    %v319 = vpop.permute.xlu0 %318
    %322 = vset.pattern.permute.xlu0 0
    %323 = vperm.xlu0 %322, %v108
    %v324 = vpop.permute.xlu0 %323
    %327 = vset.pattern.permute.xlu0 0
    %328 = vperm.xlu0 %327, %v109
    %v329 = vpop.permute.xlu0 %328
    %332 = vset.pattern.permute.xlu0 0
    %333 = vperm.xlu0 %332, %v110
    %v334 = vpop.permute.xlu0 %333
    %337 = vset.pattern.permute.xlu0 0
    %338 = vperm.xlu0 %337, %v111
    %v339 = vpop.permute.xlu0 %338
    %342 = vset.pattern.permute.xlu0 0
    %343 = vperm.xlu0 %342, %v112
    %v344 = vpop.permute.xlu0 %343
    %347 = vset.pattern.permute.xlu0 0
    %348 = vperm.xlu0 %347, %v113
    %v349 = vpop.permute.xlu0 %348
    %352 = vset.pattern.permute.xlu0 0
    %353 = vperm.xlu0 %352, %v114
    %v354 = vpop.permute.xlu0 %353
    %v356 = vmul.f32 %v279, %v214
    %v357 = vmul.f32 %v284, %v217
    %v358 = vmul.f32 %v289, %v222
    %v359 = vmul.f32 %v294, %v225
    %v360 = vmul.f32 %v299, %v230
    %v361 = vmul.f32 %v304, %v233
    %v362 = vmul.f32 %v309, %v238
    %v363 = vmul.f32 %v314, %v241
    %v364 = vmul.f32 %v319, %v246
    %v365 = vmul.f32 %v324, %v249
    %v366 = vmul.f32 %v329, %v254
    %v367 = vmul.f32 %v334, %v257
    %v368 = vmul.f32 %v339, %v262
    %v369 = vmul.f32 %v344, %v265
    %v370 = vmul.f32 %v349, %v270
    %v371 = vmul.f32 %v354, %v273
    %v372 = vld [vmem:[%s3] sm:$0xff]
    %v373 = vld [vmem:[%s3 + $0x8] sm:$0xff]
    %v374 = vld [vmem:[%s3 + $0x10] sm:$0xff]
    %v375 = vld [vmem:[%s3 + $0x18] sm:$0xff]
    %v376 = vld [vmem:[%s3 + $0x20] sm:$0xff]
    %v377 = vld [vmem:[%s3 + $0x28] sm:$0xff]
    %v378 = vld [vmem:[%s3 + $0x30] sm:$0xff]
    %v379 = vld [vmem:[%s3 + $0x38] sm:$0xff]
    %v380 = vld [vmem:[%s3 + $0x40] sm:$0xff]
    %v381 = vld [vmem:[%s3 + $0x48] sm:$0xff]
    %v382 = vld [vmem:[%s3 + $0x50] sm:$0xff]
    %v383 = vld [vmem:[%s3 + $0x58] sm:$0xff]
    %v384 = vld [vmem:[%s3 + $0x60] sm:$0xff]
    %v385 = vld [vmem:[%s3 + $0x68] sm:$0xff]
    %v386 = vld [vmem:[%s3 + $0x70] sm:$0xff]
    %v387 = vld [vmem:[%s3 + $0x78] sm:$0xff]
    %v388 = vld [vmem:[%s5] sm:$0xf]
    %v389 = vld [vmem:[%s5 + $0x4] sm:$0xf]
    %v390 = vld [vmem:[%s5 + $0x8] sm:$0xf]
    %v391 = vld [vmem:[%s5 + $0xc] sm:$0xf]
    %v392 = vld [vmem:[%s5 + $0x10] sm:$0xf]
    %v393 = vld [vmem:[%s5 + $0x14] sm:$0xf]
    %v394 = vld [vmem:[%s5 + $0x18] sm:$0xf]
    %v395 = vld [vmem:[%s5 + $0x1c] sm:$0xf]
    %v396 = vld [vmem:[%s5 + $0x20] sm:$0xf]
    %v397 = vld [vmem:[%s5 + $0x24] sm:$0xf]
    %v398 = vld [vmem:[%s5 + $0x28] sm:$0xf]
    %v399 = vld [vmem:[%s5 + $0x2c] sm:$0xf]
    %v400 = vld [vmem:[%s5 + $0x30] sm:$0xf]
    %v401 = vld [vmem:[%s5 + $0x34] sm:$0xf]
    %v402 = vld [vmem:[%s5 + $0x38] sm:$0xf]
    %v403 = vld [vmem:[%s5 + $0x3c] sm:$0xf]
    %v420 = vunpack.c.l.b16 %v388
    %v421 = vunpack.c.l.b16 %v389
    %v422 = vunpack.c.l.b16 %v390
    %v423 = vunpack.c.l.b16 %v391
    %v424 = vunpack.c.l.b16 %v392
    %v425 = vunpack.c.l.b16 %v393
    %v426 = vunpack.c.l.b16 %v394
    %v427 = vunpack.c.l.b16 %v395
    %v428 = vunpack.c.l.b16 %v396
    %v429 = vunpack.c.l.b16 %v397
    %v430 = vunpack.c.l.b16 %v398
    %v431 = vunpack.c.l.b16 %v399
    %v432 = vunpack.c.l.b16 %v400
    %v433 = vunpack.c.l.b16 %v401
    %v434 = vunpack.c.l.b16 %v402
    %v435 = vunpack.c.l.b16 %v403
    %v436 = vpack.c.b16 %v421, %v420
    %v437 = vpack.c.b16 %v423, %v422
    %v438 = vpack.c.b16 %v425, %v424
    %v439 = vpack.c.b16 %v427, %v426
    %v440 = vpack.c.b16 %v429, %v428
    %v441 = vpack.c.b16 %v431, %v430
    %v442 = vpack.c.b16 %v433, %v432
    %v443 = vpack.c.b16 %v435, %v434
    %452 = vmatprep.subr.bf16.mxu0 0
    %453 = vmatpush1.bf16.msra.mxu0 %v436
    %454 = vmatprep.subr.bf16.mxu0 0
    %455 = vmatpush1.bf16.msra.mxu0 %v437
    %456 = vmatprep.subr.bf16.mxu0 0
    %457 = vmatpush1.bf16.msra.mxu0 %v438
    %458 = vmatprep.subr.bf16.mxu0 0
    %459 = vmatpush1.bf16.msra.mxu0 %v439
    %460 = vmatprep.subr.bf16.mxu0 0
    %461 = vmatpush1.bf16.msra.mxu0 %v440
    %462 = vmatprep.subr.bf16.mxu0 0
    %463 = vmatpush1.bf16.msra.mxu0 %v441
    %464 = vmatprep.subr.bf16.mxu0 0
    %465 = vmatpush1.bf16.msra.mxu0 %v442
    %466 = vmatprep.subr.bf16.mxu0 0
    %467 = vmatpush1.bf16.msra.mxu0 %v443
    %468 = vmatprep.subr.bf16.mxu0 0
    %469 = vmatpush1.bf16.msra.mxu0 0
    %470 = vmatprep.subr.bf16.mxu0 0
    %471 = vmatpush1.bf16.msra.mxu0 0
    %472 = vmatprep.subr.bf16.mxu0 0
    %473 = vmatpush1.bf16.msra.mxu0 0
    %474 = vmatprep.subr.bf16.mxu0 0
    %475 = vmatpush1.bf16.msra.mxu0 0
    %476 = vmatprep.subr.bf16.mxu0 0
    %477 = vmatpush1.bf16.msra.mxu0 0
    %478 = vmatprep.subr.bf16.mxu0 0
    %479 = vmatpush1.bf16.msra.mxu0 0
    %480 = vmatprep.subr.bf16.mxu0 0
    %481 = vmatpush1.bf16.msra.mxu0 0
    %482 = vmatprep.subr.bf16.mxu0 0
    %483 = vmatpush1.bf16.msra.mxu0 0
    %484 = vmatprep.mubr.bf16.mxu0 0
    %485 = vmatmul.mubr.bf16.gmra.mrb[0].mxu0 %v91
    %v486 = vpop.f32.mrb[0].mxu0
    %v487 = vadd.f32 0.0, %v486
    %v488 = vpop.f32.mrb[0].mxu0
    %v489 = vpop.f32.mrb[0].mxu0
    %v490 = vadd.f32 0.0, %v489
    %v491 = vpop.f32.mrb[0].mxu0
    %492 = vmatprep.mubr.bf16.mxu0 0
    %493 = vmatmul.mubr.bf16.gmra.mrb[0].mxu0 %v92
    %v494 = vpop.f32.mrb[0].mxu0
    %v495 = vadd.f32 0.0, %v494
    %v496 = vpop.f32.mrb[0].mxu0
    %v497 = vpop.f32.mrb[0].mxu0
    %v498 = vadd.f32 0.0, %v497
    %v499 = vpop.f32.mrb[0].mxu0
    %500 = vmatprep.mubr.bf16.mxu0 0
    %501 = vmatmul.mubr.bf16.gmra.mrb[0].mxu0 %v93
    %v502 = vpop.f32.mrb[0].mxu0
    %v503 = vadd.f32 0.0, %v502
    %v504 = vpop.f32.mrb[0].mxu0
    %v505 = vpop.f32.mrb[0].mxu0
    %v506 = vadd.f32 0.0, %v505
    %v507 = vpop.f32.mrb[0].mxu0
    %508 = vmatprep.mubr.bf16.mxu0 0
    %509 = vmatmul.mubr.bf16.gmra.mrb[0].mxu0 %v94
    %v510 = vpop.f32.mrb[0].mxu0
    %v511 = vadd.f32 0.0, %v510
    %v512 = vpop.f32.mrb[0].mxu0
    %v513 = vpop.f32.mrb[0].mxu0
    %v514 = vadd.f32 0.0, %v513
    %v515 = vpop.f32.mrb[0].mxu0
    %516 = vmatprep.mubr.bf16.mxu0 0
    %517 = vmatmul.mubr.bf16.gmra.mrb[0].mxu0 %v95
    %v518 = vpop.f32.mrb[0].mxu0
    %v519 = vadd.f32 0.0, %v518
    %v520 = vpop.f32.mrb[0].mxu0
    %v521 = vpop.f32.mrb[0].mxu0
    %v522 = vadd.f32 0.0, %v521
    %v523 = vpop.f32.mrb[0].mxu0
    %524 = vmatprep.mubr.bf16.mxu0 0
    %525 = vmatmul.mubr.bf16.gmra.mrb[0].mxu0 %v96
    %v526 = vpop.f32.mrb[0].mxu0
    %v527 = vadd.f32 0.0, %v526
    %v528 = vpop.f32.mrb[0].mxu0
    %v529 = vpop.f32.mrb[0].mxu0
    %v530 = vadd.f32 0.0, %v529
    %v531 = vpop.f32.mrb[0].mxu0
    %532 = vmatprep.mubr.bf16.mxu0 0
    %533 = vmatmul.mubr.bf16.gmra.mrb[0].mxu0 %v97
    %v534 = vpop.f32.mrb[0].mxu0
    %v535 = vadd.f32 0.0, %v534
    %v536 = vpop.f32.mrb[0].mxu0
    %v537 = vpop.f32.mrb[0].mxu0
    %v538 = vadd.f32 0.0, %v537
    %v539 = vpop.f32.mrb[0].mxu0
    %540 = vmatprep.mubr.bf16.mxu0 0
    %541 = vmatmul.mubr.bf16.gmra.mrb[0].mxu0 %v98
    %v542 = vpop.f32.mrb[0].mxu0
    %v543 = vadd.f32 0.0, %v542
    %v544 = vpop.f32.mrb[0].mxu0
    %v545 = vpop.f32.mrb[0].mxu0
    %v546 = vadd.f32 0.0, %v545
    %v547 = vpop.f32.mrb[0].mxu0
    %548 = vdwg.mxu0
    %550 = vset.pattern.permute.xlu0 0
    %551 = vperm.xlu0 %550, %v372
    %v552 = vpop.permute.xlu0 %551
    %555 = vset.pattern.permute.xlu0 0
    %556 = vperm.xlu0 %555, %v373
    %v557 = vpop.permute.xlu0 %556
    %560 = vset.pattern.permute.xlu0 0
    %561 = vperm.xlu0 %560, %v374
    %v562 = vpop.permute.xlu0 %561
    %565 = vset.pattern.permute.xlu0 0
    %566 = vperm.xlu0 %565, %v375
    %v567 = vpop.permute.xlu0 %566
    %570 = vset.pattern.permute.xlu0 0
    %571 = vperm.xlu0 %570, %v376
    %v572 = vpop.permute.xlu0 %571
    %575 = vset.pattern.permute.xlu0 0
    %576 = vperm.xlu0 %575, %v377
    %v577 = vpop.permute.xlu0 %576
    %580 = vset.pattern.permute.xlu0 0
    %581 = vperm.xlu0 %580, %v378
    %v582 = vpop.permute.xlu0 %581
    %585 = vset.pattern.permute.xlu0 0
    %586 = vperm.xlu0 %585, %v379
    %v587 = vpop.permute.xlu0 %586
    %590 = vset.pattern.permute.xlu0 0
    %591 = vperm.xlu0 %590, %v380
    %v592 = vpop.permute.xlu0 %591
    %595 = vset.pattern.permute.xlu0 0
    %596 = vperm.xlu0 %595, %v381
    %v597 = vpop.permute.xlu0 %596
    %600 = vset.pattern.permute.xlu0 0
    %601 = vperm.xlu0 %600, %v382
    %v602 = vpop.permute.xlu0 %601
    %605 = vset.pattern.permute.xlu0 0
    %606 = vperm.xlu0 %605, %v383
    %v607 = vpop.permute.xlu0 %606
    %610 = vset.pattern.permute.xlu0 0
    %611 = vperm.xlu0 %610, %v384
    %v612 = vpop.permute.xlu0 %611
    %615 = vset.pattern.permute.xlu0 0
    %616 = vperm.xlu0 %615, %v385
    %v617 = vpop.permute.xlu0 %616
    %620 = vset.pattern.permute.xlu0 0
    %621 = vperm.xlu0 %620, %v386
    %v622 = vpop.permute.xlu0 %621
    %625 = vset.pattern.permute.xlu0 0
    %626 = vperm.xlu0 %625, %v387
    %v627 = vpop.permute.xlu0 %626
    %v629 = vmul.f32 %v552, %v487
    %v630 = vmul.f32 %v557, %v490
    %v631 = vmul.f32 %v562, %v495
    %v632 = vmul.f32 %v567, %v498
    %v633 = vmul.f32 %v572, %v503
    %v634 = vmul.f32 %v577, %v506
    %v635 = vmul.f32 %v582, %v511
    %v636 = vmul.f32 %v587, %v514
    %v637 = vmul.f32 %v592, %v519
    %v638 = vmul.f32 %v597, %v522
    %v639 = vmul.f32 %v602, %v527
    %v640 = vmul.f32 %v607, %v530
    %v641 = vmul.f32 %v612, %v535
    %v642 = vmul.f32 %v617, %v538
    %v643 = vmul.f32 %v622, %v543
    %v644 = vmul.f32 %v627, %v546
    %v645 = vpack.c.bf16 %v357, %v356
    %v646 = vpack.c.bf16 %v630, %v629
    %v647 = vpack.c.bf16 %v359, %v358
    %v648 = vpack.c.bf16 %v632, %v631
    %v649 = vpack.c.bf16 %v361, %v360
    %v650 = vpack.c.bf16 %v634, %v633
    %v651 = vpack.c.bf16 %v363, %v362
    %v652 = vpack.c.bf16 %v636, %v635
    %v653 = vpack.c.bf16 %v365, %v364
    %v654 = vpack.c.bf16 %v638, %v637
    %v655 = vpack.c.bf16 %v367, %v366
    %v656 = vpack.c.bf16 %v640, %v639
    %v657 = vpack.c.bf16 %v369, %v368
    %v658 = vpack.c.bf16 %v642, %v641
    %v659 = vpack.c.bf16 %v371, %v370
    %v660 = vpack.c.bf16 %v644, %v643
    %v661 = vld [vmem:[%s6] sm:$0xf]
    %v662 = vld [vmem:[%s6 + $0x4] sm:$0xf]
    %v663 = vld [vmem:[%s6 + $0x8] sm:$0xf]
    %v664 = vld [vmem:[%s6 + $0xc] sm:$0xf]
    %v665 = vld [vmem:[%s6 + $0x10] sm:$0xf]
    %v666 = vld [vmem:[%s6 + $0x14] sm:$0xf]
    %v667 = vld [vmem:[%s6 + $0x18] sm:$0xf]
    %v668 = vld [vmem:[%s6 + $0x1c] sm:$0xf]
    %v669 = vld [vmem:[%s6 + $0x20] sm:$0xf]
    %v670 = vld [vmem:[%s6 + $0x24] sm:$0xf]
    %v671 = vld [vmem:[%s6 + $0x28] sm:$0xf]
    %v672 = vld [vmem:[%s6 + $0x2c] sm:$0xf]
    %v673 = vld [vmem:[%s6 + $0x30] sm:$0xf]
    %v674 = vld [vmem:[%s6 + $0x34] sm:$0xf]
    %v675 = vld [vmem:[%s6 + $0x38] sm:$0xf]
    %v676 = vld [vmem:[%s6 + $0x3c] sm:$0xf]
    %v677 = vld [vmem:[%s6 + $0x40] sm:$0xf]
    %v678 = vld [vmem:[%s6 + $0x44] sm:$0xf]
    %v679 = vld [vmem:[%s6 + $0x48] sm:$0xf]
    %v680 = vld [vmem:[%s6 + $0x4c] sm:$0xf]
    %v681 = vld [vmem:[%s6 + $0x50] sm:$0xf]
    %v682 = vld [vmem:[%s6 + $0x54] sm:$0xf]
    %v683 = vld [vmem:[%s6 + $0x58] sm:$0xf]
    %v684 = vld [vmem:[%s6 + $0x5c] sm:$0xf]
    %v685 = vld [vmem:[%s6 + $0x60] sm:$0xf]
    %v686 = vld [vmem:[%s6 + $0x64] sm:$0xf]
    %v687 = vld [vmem:[%s6 + $0x68] sm:$0xf]
    %v688 = vld [vmem:[%s6 + $0x6c] sm:$0xf]
    %v689 = vld [vmem:[%s6 + $0x70] sm:$0xf]
    %v690 = vld [vmem:[%s6 + $0x74] sm:$0xf]
    %v691 = vld [vmem:[%s6 + $0x78] sm:$0xf]
    %v692 = vld [vmem:[%s6 + $0x7c] sm:$0xf]
    %v693 = vld [vmem:[%s7] sm:$0x1]
    %v695 = vlaneseq
    %v696 = vshrl.u32 %v695, 7
    %v697 = vsub.s32 0, %v696
    %v698 = vrot.slane %v693, %v697
    %v732 = vunpack.c.l.b16 %v661
    %v733 = vunpack.c.l.b16 %v662
    %v734 = vunpack.c.l.b16 %v663
    %v735 = vunpack.c.l.b16 %v664
    %v736 = vunpack.c.l.b16 %v665
    %v737 = vunpack.c.l.b16 %v666
    %v738 = vunpack.c.l.b16 %v667
    %v739 = vunpack.c.l.b16 %v668
    %v740 = vunpack.c.l.b16 %v669
    %v741 = vunpack.c.l.b16 %v670
    %v742 = vunpack.c.l.b16 %v671
    %v743 = vunpack.c.l.b16 %v672
    %v744 = vunpack.c.l.b16 %v673
    %v745 = vunpack.c.l.b16 %v674
    %v746 = vunpack.c.l.b16 %v675
    %v747 = vunpack.c.l.b16 %v676
    %v748 = vunpack.c.l.b16 %v677
    %v749 = vunpack.c.l.b16 %v678
    %v750 = vunpack.c.l.b16 %v679
    %v751 = vunpack.c.l.b16 %v680
    %v752 = vunpack.c.l.b16 %v681
    %v753 = vunpack.c.l.b16 %v682
    %v754 = vunpack.c.l.b16 %v683
    %v755 = vunpack.c.l.b16 %v684
    %v756 = vunpack.c.l.b16 %v685
    %v757 = vunpack.c.l.b16 %v686
    %v758 = vunpack.c.l.b16 %v687
    %v759 = vunpack.c.l.b16 %v688
    %v760 = vunpack.c.l.b16 %v689
    %v761 = vunpack.c.l.b16 %v690
    %v762 = vunpack.c.l.b16 %v691
    %v763 = vunpack.c.l.b16 %v692
    %v764 = vpack.c.b16 %v733, %v732
    %v765 = vpack.c.b16 %v735, %v734
    %v766 = vpack.c.b16 %v737, %v736
    %v767 = vpack.c.b16 %v739, %v738
    %v768 = vpack.c.b16 %v741, %v740
    %v769 = vpack.c.b16 %v743, %v742
    %v770 = vpack.c.b16 %v745, %v744
    %v771 = vpack.c.b16 %v747, %v746
    %v772 = vpack.c.b16 %v749, %v748
    %v773 = vpack.c.b16 %v751, %v750
    %v774 = vpack.c.b16 %v753, %v752
    %v775 = vpack.c.b16 %v755, %v754
    %v776 = vpack.c.b16 %v757, %v756
    %v777 = vpack.c.b16 %v759, %v758
    %v778 = vpack.c.b16 %v761, %v760
    %v779 = vpack.c.b16 %v763, %v762
    %796 = vmatprep.subr.bf16.mxu0 0
    %797 = vmatpush1.bf16.msra.mxu0 %v764
    %798 = vmatprep.subr.bf16.mxu0 0
    %799 = vmatpush1.bf16.msra.mxu0 %v765
    %800 = vmatprep.subr.bf16.mxu0 0
    %801 = vmatpush1.bf16.msra.mxu0 %v766
    %802 = vmatprep.subr.bf16.mxu0 0
    %803 = vmatpush1.bf16.msra.mxu0 %v767
    %804 = vmatprep.subr.bf16.mxu0 0
    %805 = vmatpush1.bf16.msra.mxu0 %v768
    %806 = vmatprep.subr.bf16.mxu0 0
    %807 = vmatpush1.bf16.msra.mxu0 %v769
    %808 = vmatprep.subr.bf16.mxu0 0
    %809 = vmatpush1.bf16.msra.mxu0 %v770
    %810 = vmatprep.subr.bf16.mxu0 0
    %811 = vmatpush1.bf16.msra.mxu0 %v771
    %812 = vmatprep.subr.bf16.mxu0 0
    %813 = vmatpush1.bf16.msra.mxu0 %v772
    %814 = vmatprep.subr.bf16.mxu0 0
    %815 = vmatpush1.bf16.msra.mxu0 %v773
    %816 = vmatprep.subr.bf16.mxu0 0
    %817 = vmatpush1.bf16.msra.mxu0 %v774
    %818 = vmatprep.subr.bf16.mxu0 0
    %819 = vmatpush1.bf16.msra.mxu0 %v775
    %820 = vmatprep.subr.bf16.mxu0 0
    %821 = vmatpush1.bf16.msra.mxu0 %v776
    %822 = vmatprep.subr.bf16.mxu0 0
    %823 = vmatpush1.bf16.msra.mxu0 %v777
    %824 = vmatprep.subr.bf16.mxu0 0
    %825 = vmatpush1.bf16.msra.mxu0 %v778
    %826 = vmatprep.subr.bf16.mxu0 0
    %827 = vmatpush1.bf16.msra.mxu0 %v779
    %828 = vmatprep.mubr.bf16.mxu0 %v646
    %829 = vmatmul.mubr.bf16.gmra.mrb[0].mxu0 %v645
    %v830 = vpop.f32.mrb[0].mxu0
    %v831 = vadd.f32 %v698, %v830
    %v832 = vpop.f32.mrb[0].mxu0
    %v833 = vpop.f32.mrb[0].mxu0
    %v834 = vadd.f32 %v698, %v833
    %v835 = vpop.f32.mrb[0].mxu0
    %836 = vmatprep.mubr.bf16.mxu0 %v648
    %837 = vmatmul.mubr.bf16.gmra.mrb[0].mxu0 %v647
    %v838 = vpop.f32.mrb[0].mxu0
    %v839 = vadd.f32 %v698, %v838
    %v840 = vpop.f32.mrb[0].mxu0
    %v841 = vpop.f32.mrb[0].mxu0
    %v842 = vadd.f32 %v698, %v841
    %v843 = vpop.f32.mrb[0].mxu0
    %844 = vmatprep.mubr.bf16.mxu0 %v650
    %845 = vmatmul.mubr.bf16.gmra.mrb[0].mxu0 %v649
    %v846 = vpop.f32.mrb[0].mxu0
    %v847 = vadd.f32 %v698, %v846
    %v848 = vpop.f32.mrb[0].mxu0
    %v849 = vpop.f32.mrb[0].mxu0
    %v850 = vadd.f32 %v698, %v849
    %v851 = vpop.f32.mrb[0].mxu0
    %852 = vmatprep.mubr.bf16.mxu0 %v652
    %853 = vmatmul.mubr.bf16.gmra.mrb[0].mxu0 %v651
    %v854 = vpop.f32.mrb[0].mxu0
    %v855 = vadd.f32 %v698, %v854
    %v856 = vpop.f32.mrb[0].mxu0
    %v857 = vpop.f32.mrb[0].mxu0
    %v858 = vadd.f32 %v698, %v857
    %v859 = vpop.f32.mrb[0].mxu0
    %860 = vmatprep.mubr.bf16.mxu0 %v654
    %861 = vmatmul.mubr.bf16.gmra.mrb[0].mxu0 %v653
    %v862 = vpop.f32.mrb[0].mxu0
    %v863 = vadd.f32 %v698, %v862
    %v864 = vpop.f32.mrb[0].mxu0
    %v865 = vpop.f32.mrb[0].mxu0
    %v866 = vadd.f32 %v698, %v865
    %v867 = vpop.f32.mrb[0].mxu0
    %868 = vmatprep.mubr.bf16.mxu0 %v656
    %869 = vmatmul.mubr.bf16.gmra.mrb[0].mxu0 %v655
    %v870 = vpop.f32.mrb[0].mxu0
    %v871 = vadd.f32 %v698, %v870
    %v872 = vpop.f32.mrb[0].mxu0
    %v873 = vpop.f32.mrb[0].mxu0
    %v874 = vadd.f32 %v698, %v873
    %v875 = vpop.f32.mrb[0].mxu0
    %876 = vmatprep.mubr.bf16.mxu0 %v658
    %877 = vmatmul.mubr.bf16.gmra.mrb[0].mxu0 %v657
    %v878 = vpop.f32.mrb[0].mxu0
    %v879 = vadd.f32 %v698, %v878
    %v880 = vpop.f32.mrb[0].mxu0
    %v881 = vpop.f32.mrb[0].mxu0
    %v882 = vadd.f32 %v698, %v881
    %v883 = vpop.f32.mrb[0].mxu0
    %884 = vmatprep.mubr.bf16.mxu0 %v660
    %885 = vmatmul.mubr.bf16.gmra.mrb[0].mxu0 %v659
    %v886 = vpop.f32.mrb[0].mxu0
    %v887 = vadd.f32 %v698, %v886
    %v888 = vpop.f32.mrb[0].mxu0
    %v889 = vpop.f32.mrb[0].mxu0
    %v890 = vadd.f32 %v698, %v889
    %v891 = vpop.f32.mrb[0].mxu0
    %892 = vdwg.mxu0
    %v893 = vmax.f32 %v831, 0.0
    %v894 = vmax.f32 %v834, 0.0
    %v895 = vmax.f32 %v839, 0.0
    %v896 = vmax.f32 %v842, 0.0
    %v897 = vmax.f32 %v847, 0.0
    %v898 = vmax.f32 %v850, 0.0
    %v899 = vmax.f32 %v855, 0.0
    %v900 = vmax.f32 %v858, 0.0
    %v901 = vmax.f32 %v863, 0.0
    %v902 = vmax.f32 %v866, 0.0
    %v903 = vmax.f32 %v871, 0.0
    %v904 = vmax.f32 %v874, 0.0
    %v905 = vmax.f32 %v879, 0.0
    %v906 = vmax.f32 %v882, 0.0
    %v907 = vmax.f32 %v887, 0.0
    %v908 = vmax.f32 %v890, 0.0
    %v909 = vpack.c.bf16 %v894, %v893
    %v910 = vpack.c.bf16 %v896, %v895
    %v911 = vpack.c.bf16 %v898, %v897
    %v912 = vpack.c.bf16 %v900, %v899
    %v913 = vpack.c.bf16 %v902, %v901
    %v914 = vpack.c.bf16 %v904, %v903
    %v915 = vpack.c.bf16 %v906, %v905
    %v916 = vpack.c.bf16 %v908, %v907
    %v917 = vld [vmem:[#allocation7] sm:$0xf]
    %v918 = vld [vmem:[#allocation7 + $0x4] sm:$0xf]
    %v919 = vld [vmem:[#allocation7 + $0x8] sm:$0xf]
    %v920 = vld [vmem:[#allocation7 + $0xc] sm:$0xf]
    %v921 = vld [vmem:[#allocation7 + $0x10] sm:$0xf]
    %v922 = vld [vmem:[#allocation7 + $0x14] sm:$0xf]
    %v923 = vld [vmem:[#allocation7 + $0x18] sm:$0xf]
    %v924 = vld [vmem:[#allocation7 + $0x1c] sm:$0xf]
    %v925 = vld [vmem:[#allocation7 + $0x20] sm:$0xf]
    %v926 = vld [vmem:[#allocation7 + $0x24] sm:$0xf]
    %v927 = vld [vmem:[#allocation7 + $0x28] sm:$0xf]
    %v928 = vld [vmem:[#allocation7 + $0x2c] sm:$0xf]
    %v929 = vld [vmem:[#allocation7 + $0x30] sm:$0xf]
    %v930 = vld [vmem:[#allocation7 + $0x34] sm:$0xf]
    %v931 = vld [vmem:[#allocation7 + $0x38] sm:$0xf]
    %v932 = vld [vmem:[#allocation7 + $0x3c] sm:$0xf]
    %v949 = vunpack.c.l.b16 %v917
    %v950 = vunpack.c.l.b16 %v918
    %v951 = vunpack.c.l.b16 %v919
    %v952 = vunpack.c.l.b16 %v920
    %v953 = vunpack.c.l.b16 %v921
    %v954 = vunpack.c.l.b16 %v922
    %v955 = vunpack.c.l.b16 %v923
    %v956 = vunpack.c.l.b16 %v924
    %v957 = vunpack.c.l.b16 %v925
    %v958 = vunpack.c.l.b16 %v926
    %v959 = vunpack.c.l.b16 %v927
    %v960 = vunpack.c.l.b16 %v928
    %v961 = vunpack.c.l.b16 %v929
    %v962 = vunpack.c.l.b16 %v930
    %v963 = vunpack.c.l.b16 %v931
    %v964 = vunpack.c.l.b16 %v932
    %v965 = vpack.c.b16 %v950, %v949
    %v966 = vpack.c.b16 %v952, %v951
    %v967 = vpack.c.b16 %v954, %v953
    %v968 = vpack.c.b16 %v956, %v955
    %v969 = vpack.c.b16 %v958, %v957
    %v970 = vpack.c.b16 %v960, %v959
    %v971 = vpack.c.b16 %v962, %v961
    %v972 = vpack.c.b16 %v964, %v963
    %981 = vmatprep.subr.bf16.mxu0 0
    %982 = vmatpush1.bf16.msra.mxu0 %v965
    %983 = vmatprep.subr.bf16.mxu0 0
    %984 = vmatpush1.bf16.msra.mxu0 %v966
    %985 = vmatprep.subr.bf16.mxu0 0
    %986 = vmatpush1.bf16.msra.mxu0 %v967
    %987 = vmatprep.subr.bf16.mxu0 0
    %988 = vmatpush1.bf16.msra.mxu0 %v968
    %989 = vmatprep.subr.bf16.mxu0 0
    %990 = vmatpush1.bf16.msra.mxu0 %v969
    %991 = vmatprep.subr.bf16.mxu0 0
    %992 = vmatpush1.bf16.msra.mxu0 %v970
    %993 = vmatprep.subr.bf16.mxu0 0
    %994 = vmatpush1.bf16.msra.mxu0 %v971
    %995 = vmatprep.subr.bf16.mxu0 0
    %996 = vmatpush1.bf16.msra.mxu0 %v972
    %997 = vmatprep.subr.bf16.mxu0 0
    %998 = vmatpush1.bf16.msra.mxu0 0
    %999 = vmatprep.subr.bf16.mxu0 0
    %1000 = vmatpush1.bf16.msra.mxu0 0
    %1001 = vmatprep.subr.bf16.mxu0 0
    %1002 = vmatpush1.bf16.msra.mxu0 0
    %1003 = vmatprep.subr.bf16.mxu0 0
    %1004 = vmatpush1.bf16.msra.mxu0 0
    %1005 = vmatprep.subr.bf16.mxu0 0
    %1006 = vmatpush1.bf16.msra.mxu0 0
    %1007 = vmatprep.subr.bf16.mxu0 0
    %1008 = vmatpush1.bf16.msra.mxu0 0
    %1009 = vmatprep.subr.bf16.mxu0 0
    %1010 = vmatpush1.bf16.msra.mxu0 0
    %1011 = vmatprep.subr.bf16.mxu0 0
    %1012 = vmatpush1.bf16.msra.mxu0 0
    %1013 = vmatprep.mubr.bf16.mxu0 0
    %1014 = vmatmul.mubr.bf16.gmra.mrb[0].mxu0 %v909
    %v1015 = vpop.f32.mrb[0].mxu0
    %v1016 = vadd.f32 0.0, %v1015
    %v1017 = vpop.f32.mrb[0].mxu0
    %v1018 = vpop.f32.mrb[0].mxu0
    %v1019 = vadd.f32 0.0, %v1018
    %v1020 = vpop.f32.mrb[0].mxu0
    %1021 = vmatprep.mubr.bf16.mxu0 0
    %1022 = vmatmul.mubr.bf16.gmra.mrb[0].mxu0 %v910
    %v1023 = vpop.f32.mrb[0].mxu0
    %v1024 = vadd.f32 0.0, %v1023
    %v1025 = vpop.f32.mrb[0].mxu0
    %v1026 = vpop.f32.mrb[0].mxu0
    %v1027 = vadd.f32 0.0, %v1026
    %v1028 = vpop.f32.mrb[0].mxu0
    %1029 = vmatprep.mubr.bf16.mxu0 0
    %1030 = vmatmul.mubr.bf16.gmra.mrb[0].mxu0 %v911
    %v1031 = vpop.f32.mrb[0].mxu0
    %v1032 = vadd.f32 0.0, %v1031
    %v1033 = vpop.f32.mrb[0].mxu0
    %v1034 = vpop.f32.mrb[0].mxu0
    %v1035 = vadd.f32 0.0, %v1034
    %v1036 = vpop.f32.mrb[0].mxu0
    %1037 = vmatprep.mubr.bf16.mxu0 0
    %1038 = vmatmul.mubr.bf16.gmra.mrb[0].mxu0 %v912
    %v1039 = vpop.f32.mrb[0].mxu0
    %v1040 = vadd.f32 0.0, %v1039
    %v1041 = vpop.f32.mrb[0].mxu0
    %v1042 = vpop.f32.mrb[0].mxu0
    %v1043 = vadd.f32 0.0, %v1042
    %v1044 = vpop.f32.mrb[0].mxu0
    %1045 = vmatprep.mubr.bf16.mxu0 0
    %1046 = vmatmul.mubr.bf16.gmra.mrb[0].mxu0 %v913
    %v1047 = vpop.f32.mrb[0].mxu0
    %v1048 = vadd.f32 0.0, %v1047
    %v1049 = vpop.f32.mrb[0].mxu0
    %v1050 = vpop.f32.mrb[0].mxu0
    %v1051 = vadd.f32 0.0, %v1050
    %v1052 = vpop.f32.mrb[0].mxu0
    %1053 = vmatprep.mubr.bf16.mxu0 0
    %1054 = vmatmul.mubr.bf16.gmra.mrb[0].mxu0 %v914
    %v1055 = vpop.f32.mrb[0].mxu0
    %v1056 = vadd.f32 0.0, %v1055
    %v1057 = vpop.f32.mrb[0].mxu0
    %v1058 = vpop.f32.mrb[0].mxu0
    %v1059 = vadd.f32 0.0, %v1058
    %v1060 = vpop.f32.mrb[0].mxu0
    %1061 = vmatprep.mubr.bf16.mxu0 0
    %1062 = vmatmul.mubr.bf16.gmra.mrb[0].mxu0 %v915
    %v1063 = vpop.f32.mrb[0].mxu0
    %v1064 = vadd.f32 0.0, %v1063
    %v1065 = vpop.f32.mrb[0].mxu0
    %v1066 = vpop.f32.mrb[0].mxu0
    %v1067 = vadd.f32 0.0, %v1066
    %v1068 = vpop.f32.mrb[0].mxu0
    %1069 = vmatprep.mubr.bf16.mxu0 0
    %1070 = vmatmul.mubr.bf16.gmra.mrb[0].mxu0 %v916
    %v1071 = vpop.f32.mrb[0].mxu0
    %v1072 = vadd.f32 0.0, %v1071
    %v1073 = vpop.f32.mrb[0].mxu0
    %v1074 = vpop.f32.mrb[0].mxu0
    %v1075 = vadd.f32 0.0, %v1074
    %v1076 = vpop.f32.mrb[0].mxu0
    %1077 = vdwg.mxu0
    %v1078 = vmul.f32 %v552, %v1016
    %v1079 = vmul.f32 %v557, %v1019
    %v1080 = vmul.f32 %v562, %v1024
    %v1081 = vmul.f32 %v567, %v1027
    %v1082 = vmul.f32 %v572, %v1032
    %v1083 = vmul.f32 %v577, %v1035
    %v1084 = vmul.f32 %v582, %v1040
    %v1085 = vmul.f32 %v587, %v1043
    %v1086 = vmul.f32 %v592, %v1048
    %v1087 = vmul.f32 %v597, %v1051
    %v1088 = vmul.f32 %v602, %v1056
    %v1089 = vmul.f32 %v607, %v1059
    %v1090 = vmul.f32 %v612, %v1064
    %v1091 = vmul.f32 %v617, %v1067
    %v1092 = vmul.f32 %v622, %v1072
    %v1093 = vmul.f32 %v627, %v1075
    %v1094 = vpack.c.bf16 %v1079, %v1078
    %v1095 = vpack.c.bf16 %v1081, %v1080
    %v1096 = vpack.c.bf16 %v1083, %v1082
    %v1097 = vpack.c.bf16 %v1085, %v1084
    %v1098 = vpack.c.bf16 %v1087, %v1086
    %v1099 = vpack.c.bf16 %v1089, %v1088
    %v1100 = vpack.c.bf16 %v1091, %v1090
    %v1101 = vpack.c.bf16 %v1093, %v1092
    %v1110 = vunpack.c.l.b16 %v1094
    %v1111 = vunpack.c.h.b16 %v1094
    %v1112 = vunpack.c.l.b16 %v1095
    %v1113 = vunpack.c.h.b16 %v1095
    %v1114 = vunpack.c.l.b16 %v1096
    %v1115 = vunpack.c.h.b16 %v1096
    %v1116 = vunpack.c.l.b16 %v1097
    %v1117 = vunpack.c.h.b16 %v1097
    %v1118 = vunpack.c.l.b16 %v1098
    %v1119 = vunpack.c.h.b16 %v1098
    %v1120 = vunpack.c.l.b16 %v1099
    %v1121 = vunpack.c.h.b16 %v1099
    %v1122 = vunpack.c.l.b16 %v1100
    %v1123 = vunpack.c.h.b16 %v1100
    %v1124 = vunpack.c.l.b16 %v1101
    %v1125 = vunpack.c.h.b16 %v1101
    %v1126 = vpack.c.b16 %v1110, %v1110
    %v1127 = vpack.c.b16 %v1111, %v1111
    %v1128 = vpack.c.b16 %v1112, %v1112
    %v1129 = vpack.c.b16 %v1113, %v1113
    %v1130 = vpack.c.b16 %v1114, %v1114
    %v1131 = vpack.c.b16 %v1115, %v1115
    %v1132 = vpack.c.b16 %v1116, %v1116
    %v1133 = vpack.c.b16 %v1117, %v1117
    %v1134 = vpack.c.b16 %v1118, %v1118
    %v1135 = vpack.c.b16 %v1119, %v1119
    %v1136 = vpack.c.b16 %v1120, %v1120
    %v1137 = vpack.c.b16 %v1121, %v1121
    %v1138 = vpack.c.b16 %v1122, %v1122
    %v1139 = vpack.c.b16 %v1123, %v1123
    %v1140 = vpack.c.b16 %v1124, %v1124
    %v1141 = vpack.c.b16 %v1125, %v1125
    %1158 = vst [vmem:[#allocation8] sm:$0xf] %v1126
    %1159 = vst [vmem:[#allocation8 + $0x4] sm:$0xf] %v1127
    %1160 = vst [vmem:[#allocation8 + $0x8] sm:$0xf] %v1128
    %1161 = vst [vmem:[#allocation8 + $0xc] sm:$0xf] %v1129
    %1162 = vst [vmem:[#allocation8 + $0x10] sm:$0xf] %v1130
    %1163 = vst [vmem:[#allocation8 + $0x14] sm:$0xf] %v1131
    %1164 = vst [vmem:[#allocation8 + $0x18] sm:$0xf] %v1132
    %1165 = vst [vmem:[#allocation8 + $0x1c] sm:$0xf] %v1133
    %1166 = vst [vmem:[#allocation8 + $0x20] sm:$0xf] %v1134
    %1167 = vst [vmem:[#allocation8 + $0x24] sm:$0xf] %v1135
    %1168 = vst [vmem:[#allocation8 + $0x28] sm:$0xf] %v1136
    %1169 = vst [vmem:[#allocation8 + $0x2c] sm:$0xf] %v1137
    %1170 = vst [vmem:[#allocation8 + $0x30] sm:$0xf] %v1138
    %1171 = vst [vmem:[#allocation8 + $0x34] sm:$0xf] %v1139
    %1172 = vst [vmem:[#allocation8 + $0x38] sm:$0xf] %v1140
    %1173 = vst [vmem:[#allocation8 + $0x3c] sm:$0xf] %v1141
    // Predicated region
    $region50: #{tpu_custom_call.1} parent=1 // pred_check
      _
    $region51: #{tpu_custom_call.1} parent=1 // pred_check_branch
      %1175 = sbr.rel (0) target = $region53
    $region52: #{tpu_custom_call.1} parent=1 // pred_region
      %s1177 = ssub.s32 1024, 1024
      %1178 = vsyncadd [#allocation4], %s1177
      %s1179 = sshll.u32 [#allocation8], 4
      %s1180 = int_to_ptr.vmem [resolvable:$true] %s1179
      %1185 = dma.vmem_to_hbm [thread:$0]  %s1180, 1024, %s9, [#allocation4], 64, 64, 4
    $region53: #{tpu_custom_call.1} parent=1 // pred_fallthru
      _
    // Predicated region
    $region54: #{tpu_custom_call.1} parent=1 // pred_check
      _
    $region55: #{tpu_custom_call.1} parent=1 // pred_check_branch
      %1187 = sbr.rel (0) target = $region57
    $region56: #{tpu_custom_call.1} parent=1 // pred_region
      %1188 = dma.done [#allocation4], 1024
    $region57: #{tpu_custom_call.1} parent=1 // pred_fallthru
      _
    %1189 = vsyncpa [#allocation3], 1
    %1190 = vsyncpa [#allocation6], 1
    %1191 = vsyncpa [#allocation4], 1

// kernel: tpu_custom_call.1
$region0: #{tpu_custom_call.1}
  #allocation0 [shape = 'u32[]', space=smem, size = 0x4, offset = 0x4, fixed_abs, tag = 'smem constant byte address 0x4 - core index']
  #allocation1 [shape = 'u32[144,128]{1,0:T(1,128)}', space=vmem, size = 0x12000, scoped, tag = 'internal scratch']
  %s0 = inlined_call_operand.hbm [shape: s8[128,128], index: 0, kind: input, shape index: {}]
  %s1 = inlined_call_operand.hbm [shape: s8[128,128], index: 1, kind: input, shape index: {}]
  %s2 = inlined_call_operand.vmem [shape: f32[128,1], index: 2, kind: input, shape index: {}]
  %s3 = inlined_call_operand.vmem [shape: f32[128,1], index: 3, kind: input, shape index: {}]
  %s4 = inlined_call_operand.vmem [shape: bf16[128,128], index: 4, kind: input, shape index: {}]
  %s5 = inlined_call_operand.vmem [shape: bf16[128,128], index: 5, kind: input, shape index: {}]
  %s6 = inlined_call_operand.vmem [shape: bf16[256,128], index: 6, kind: input, shape index: {}]
  %s7 = inlined_call_operand.vmem [shape: f32[1,128], index: 7, kind: input, shape index: {}]
  %s8 = inlined_call_operand.hbm [shape: bf16[128,128], index: 8, kind: input, shape index: {}]
  %s9 = inlined_call_operand.hbm [shape: bf16[128,128], index: 9, kind: output, shape index: {}]
  %s10 = sld [smem:[#allocation0]]
  $region58: #{tpu_custom_call.1} parent=0
    _
  %s12 = ssub.s32 1, %s10
  %s13 = scalar_select 0, %s12, %s10
  $region1: #{tpu_custom_call.1} parent=0
    #allocation2 [shape = 'u8[16384]{0}', space=vmem, size = 0x4000, scoped, tag = 'input window, operand 0, single buffered']
    #allocation3 [shape = 's32[1]{0}', space=sflag, size = 0x4, scoped, tag = 'scoped memory for tpu_custom_call.1']
    #allocation4 [shape = 's32[1]{0}', space=sflag, size = 0x4, scoped, tag = 'scoped memory for tpu_custom_call.1']
    #allocation5 [shape = 'u8[16384]{0}', space=vmem, size = 0x4000, scoped, tag = 'input window, operand 1, single buffered']
    #allocation6 [shape = 's32[1]{0}', space=sflag, size = 0x4, scoped, tag = 'scoped memory for tpu_custom_call.1']
    #allocation7 [shape = 'u8[32768]{0}', space=vmem, size = 0x8000, scoped, tag = 'input window, operand 8, single buffered']
    #allocation8 [shape = 'u8[32768]{0}', space=vmem, size = 0x8000, scoped, tag = 'output window, operand 0, single buffered']
    %14 = vsyncpa [#allocation3], 0
    %15 = vsyncpa [#allocation6], 0
    %16 = vsyncpa [#allocation4], 0
    // Predicated region
    $region2: #{tpu_custom_call.1} parent=1 // pred_check
      _
    $region3: #{tpu_custom_call.1} parent=1 // pred_check_branch
      %18 = sbr.rel (0) target = $region5
    $region4: #{tpu_custom_call.1} parent=1 // pred_region
      %s20 = ssub.s32 512, 512
      %21 = vsyncadd [#allocation3], %s20
      %s22 = sshll.u32 [#allocation2], 4
      %s23 = int_to_ptr.vmem [resolvable:$true] %s22
      %28 = dma.hbm_to_vmem [thread:$0]  %s0, 512, %s23, [#allocation3], 128, 128, 8
    $region5: #{tpu_custom_call.1} parent=1 // pred_fallthru
      _
    // Predicated region
    $region6: #{tpu_custom_call.1} parent=1 // pred_check
      _
    $region7: #{tpu_custom_call.1} parent=1 // pred_check_branch
      %30 = sbr.rel (0) target = $region9
    $region8: #{tpu_custom_call.1} parent=1 // pred_region
      %s32 = ssub.s32 512, 512
      %33 = vsyncadd [#allocation6], %s32
      %s34 = sshll.u32 [#allocation5], 4
      %s35 = int_to_ptr.vmem [resolvable:$true] %s34
      %40 = dma.hbm_to_vmem [thread:$0]  %s1, 512, %s35, [#allocation6], 128, 128, 8
    $region9: #{tpu_custom_call.1} parent=1 // pred_fallthru
      _
    // Predicated region
    $region10: #{tpu_custom_call.1} parent=1 // pred_check
      _
    $region11: #{tpu_custom_call.1} parent=1 // pred_check_branch
      %42 = sbr.rel (0) target = $region13
    $region12: #{tpu_custom_call.1} parent=1 // pred_region
      _
    $region13: #{tpu_custom_call.1} parent=1 // pred_fallthru
      _
    // Predicated region
    $region14: #{tpu_custom_call.1} parent=1 // pred_check
      _
    $region15: #{tpu_custom_call.1} parent=1 // pred_check_branch
      %44 = sbr.rel (0) target = $region17
    $region16: #{tpu_custom_call.1} parent=1 // pred_region
      _
    $region17: #{tpu_custom_call.1} parent=1 // pred_fallthru
      _
    // Predicated region
    $region18: #{tpu_custom_call.1} parent=1 // pred_check
      _
    $region19: #{tpu_custom_call.1} parent=1 // pred_check_branch
      %46 = sbr.rel (0) target = $region21
    $region20: #{tpu_custom_call.1} parent=1 // pred_region
      _
    $region21: #{tpu_custom_call.1} parent=1 // pred_fallthru
      _
    // Predicated region
    $region22: #{tpu_custom_call.1} parent=1 // pred_check
      _
    $region23: #{tpu_custom_call.1} parent=1 // pred_check_branch
      %48 = sbr.rel (0) target = $region25
    $region24: #{tpu_custom_call.1} parent=1 // pred_region
      _
    $region25: #{tpu_custom_call.1} parent=1 // pred_fallthru
      _
    // Predicated region
    $region26: #{tpu_custom_call.1} parent=1 // pred_check
      _
    $region27: #{tpu_custom_call.1} parent=1 // pred_check_branch
      %50 = sbr.rel (0) target = $region29
    $region28: #{tpu_custom_call.1} parent=1 // pred_region
      _
    $region29: #{tpu_custom_call.1} parent=1 // pred_fallthru
      _
    // Predicated region
    $region30: #{tpu_custom_call.1} parent=1 // pred_check
      _
    $region31: #{tpu_custom_call.1} parent=1 // pred_check_branch
      %52 = sbr.rel (0) target = $region33
    $region32: #{tpu_custom_call.1} parent=1 // pred_region
      _
    $region33: #{tpu_custom_call.1} parent=1 // pred_fallthru
      _
    // Predicated region
    $region34: #{tpu_custom_call.1} parent=1 // pred_check
      _
    $region35: #{tpu_custom_call.1} parent=1 // pred_check_branch
      %54 = sbr.rel (0) target = $region37
    $region36: #{tpu_custom_call.1} parent=1 // pred_region
      %s56 = ssub.s32 1024, 1024
      %57 = vsyncadd [#allocation6], %s56
      %s58 = sshll.u32 [#allocation7], 4
      %s59 = int_to_ptr.vmem [resolvable:$true] %s58
      %64 = dma.hbm_to_vmem [thread:$0]  %s8, 1024, %s59, [#allocation6], 64, 64, 4
    $region37: #{tpu_custom_call.1} parent=1 // pred_fallthru
      _
    // Predicated region
    $region38: #{tpu_custom_call.1} parent=1 // pred_check
      _
    $region39: #{tpu_custom_call.1} parent=1 // pred_check_branch
      %66 = sbr.rel (0) target = $region41
    $region40: #{tpu_custom_call.1} parent=1 // pred_region
      %67 = dma.done [#allocation3], 512
    $region41: #{tpu_custom_call.1} parent=1 // pred_fallthru
      _
    // Predicated region
    $region42: #{tpu_custom_call.1} parent=1 // pred_check
      _
    $region43: #{tpu_custom_call.1} parent=1 // pred_check_branch
      %69 = sbr.rel (0) target = $region45
    $region44: #{tpu_custom_call.1} parent=1 // pred_region
      %70 = dma.done [#allocation6], 512
    $region45: #{tpu_custom_call.1} parent=1 // pred_fallthru
      _
    // Predicated region
    $region46: #{tpu_custom_call.1} parent=1 // pred_check
      _
    $region47: #{tpu_custom_call.1} parent=1 // pred_check_branch
      %72 = sbr.rel (0) target = $region49
    $region48: #{tpu_custom_call.1} parent=1 // pred_region
      %73 = dma.done [#allocation6], 1024
    $region49: #{tpu_custom_call.1} parent=1 // pred_fallthru
      _
    %v75 = vld [vmem:[#allocation2] sm:$0xff]
    %v76 = vld [vmem:[#allocation2 + $0x8] sm:$0xff]
    %v77 = vld [vmem:[#allocation2 + $0x10] sm:$0xff]
    %v78 = vld [vmem:[#allocation2 + $0x18] sm:$0xff]
    %v79 = vunpack.c.l.s8.bf16 %v75
    %v80 = vunpack.c.h.s8.bf16 %v75
    %v81 = vunpack.c.l.s8.bf16 %v76
    %v82 = vunpack.c.h.s8.bf16 %v76
    %v83 = vunpack.c.l.s8.bf16 %v77
    %v84 = vunpack.c.h.s8.bf16 %v77
    %v85 = vunpack.c.l.s8.bf16 %v78
    %v86 = vunpack.c.h.s8.bf16 %v78
    %v87 = vld [vmem:[#allocation5] sm:$0xff]
    %v88 = vld [vmem:[#allocation5 + $0x8] sm:$0xff]
    %v89 = vld [vmem:[#allocation5 + $0x10] sm:$0xff]
    %v90 = vld [vmem:[#allocation5 + $0x18] sm:$0xff]
    %v91 = vunpack.c.l.s8.bf16 %v87
    %v92 = vunpack.c.h.s8.bf16 %v87
    %v93 = vunpack.c.l.s8.bf16 %v88
    %v94 = vunpack.c.h.s8.bf16 %v88
    %v95 = vunpack.c.l.s8.bf16 %v89
    %v96 = vunpack.c.h.s8.bf16 %v89
    %v97 = vunpack.c.l.s8.bf16 %v90
    %v98 = vunpack.c.h.s8.bf16 %v90
    %v99 = vld [vmem:[%s2] sm:$0xff]
    %v100 = vld [vmem:[%s2 + $0x8] sm:$0xff]
    %v101 = vld [vmem:[%s2 + $0x10] sm:$0xff]
    %v102 = vld [vmem:[%s2 + $0x18] sm:$0xff]
    %v103 = vld [vmem:[%s2 + $0x20] sm:$0xff]
    %v104 = vld [vmem:[%s2 + $0x28] sm:$0xff]
    %v105 = vld [vmem:[%s2 + $0x30] sm:$0xff]
    %v106 = vld [vmem:[%s2 + $0x38] sm:$0xff]
    %v107 = vld [vmem:[%s2 + $0x40] sm:$0xff]
    %v108 = vld [vmem:[%s2 + $0x48] sm:$0xff]
    %v109 = vld [vmem:[%s2 + $0x50] sm:$0xff]
    %v110 = vld [vmem:[%s2 + $0x58] sm:$0xff]
    %v111 = vld [vmem:[%s2 + $0x60] sm:$0xff]
    %v112 = vld [vmem:[%s2 + $0x68] sm:$0xff]
    %v113 = vld [vmem:[%s2 + $0x70] sm:$0xff]
    %v114 = vld [vmem:[%s2 + $0x78] sm:$0xff]
    %v115 = vld [vmem:[%s4] sm:$0xf]
    %v116 = vld [vmem:[%s4 + $0x4] sm:$0xf]
    %v117 = vld [vmem:[%s4 + $0x8] sm:$0xf]
    %v118 = vld [vmem:[%s4 + $0xc] sm:$0xf]
    %v119 = vld [vmem:[%s4 + $0x10] sm:$0xf]
    %v120 = vld [vmem:[%s4 + $0x14] sm:$0xf]
    %v121 = vld [vmem:[%s4 + $0x18] sm:$0xf]
    %v122 = vld [vmem:[%s4 + $0x1c] sm:$0xf]
    %v123 = vld [vmem:[%s4 + $0x20] sm:$0xf]
    %v124 = vld [vmem:[%s4 + $0x24] sm:$0xf]
    %v125 = vld [vmem:[%s4 + $0x28] sm:$0xf]
    %v126 = vld [vmem:[%s4 + $0x2c] sm:$0xf]
    %v127 = vld [vmem:[%s4 + $0x30] sm:$0xf]
    %v128 = vld [vmem:[%s4 + $0x34] sm:$0xf]
    %v129 = vld [vmem:[%s4 + $0x38] sm:$0xf]
    %v130 = vld [vmem:[%s4 + $0x3c] sm:$0xf]
    %v147 = vunpack.c.l.b16 %v115
    %v148 = vunpack.c.l.b16 %v116
    %v149 = vunpack.c.l.b16 %v117
    %v150 = vunpack.c.l.b16 %v118
    %v151 = vunpack.c.l.b16 %v119
    %v152 = vunpack.c.l.b16 %v120
    %v153 = vunpack.c.l.b16 %v121
    %v154 = vunpack.c.l.b16 %v122
    %v155 = vunpack.c.l.b16 %v123
    %v156 = vunpack.c.l.b16 %v124
    %v157 = vunpack.c.l.b16 %v125
    %v158 = vunpack.c.l.b16 %v126
    %v159 = vunpack.c.l.b16 %v127
    %v160 = vunpack.c.l.b16 %v128
    %v161 = vunpack.c.l.b16 %v129
    %v162 = vunpack.c.l.b16 %v130
    %v163 = vpack.c.b16 %v148, %v147
    %v164 = vpack.c.b16 %v150, %v149
    %v165 = vpack.c.b16 %v152, %v151
    %v166 = vpack.c.b16 %v154, %v153
    %v167 = vpack.c.b16 %v156, %v155
    %v168 = vpack.c.b16 %v158, %v157
    %v169 = vpack.c.b16 %v160, %v159
    %v170 = vpack.c.b16 %v162, %v161
    %179 = vmatprep.subr.bf16.mxu0 0
    %180 = vmatpush1.bf16.msra.mxu0 %v163
    %181 = vmatprep.subr.bf16.mxu0 0
    %182 = vmatpush1.bf16.msra.mxu0 %v164
    %183 = vmatprep.subr.bf16.mxu0 0
    %184 = vmatpush1.bf16.msra.mxu0 %v165
    %185 = vmatprep.subr.bf16.mxu0 0
    %186 = vmatpush1.bf16.msra.mxu0 %v166
    %187 = vmatprep.subr.bf16.mxu0 0
    %188 = vmatpush1.bf16.msra.mxu0 %v167
    %189 = vmatprep.subr.bf16.mxu0 0
    %190 = vmatpush1.bf16.msra.mxu0 %v168
    %191 = vmatprep.subr.bf16.mxu0 0
    %192 = vmatpush1.bf16.msra.mxu0 %v169
    %193 = vmatprep.subr.bf16.mxu0 0
    %194 = vmatpush1.bf16.msra.mxu0 %v170
    %195 = vmatprep.subr.bf16.mxu0 0
    %196 = vmatpush1.bf16.msra.mxu0 0
    %197 = vmatprep.subr.bf16.mxu0 0
    %198 = vmatpush1.bf16.msra.mxu0 0
    %199 = vmatprep.subr.bf16.mxu0 0
    %200 = vmatpush1.bf16.msra.mxu0 0
    %201 = vmatprep.subr.bf16.mxu0 0
    %202 = vmatpush1.bf16.msra.mxu0 0
    %203 = vmatprep.subr.bf16.mxu0 0
    %204 = vmatpush1.bf16.msra.mxu0 0
    %205 = vmatprep.subr.bf16.mxu0 0
    %206 = vmatpush1.bf16.msra.mxu0 0
    %207 = vmatprep.subr.bf16.mxu0 0
    %208 = vmatpush1.bf16.msra.mxu0 0
    %209 = vmatprep.subr.bf16.mxu0 0
    %210 = vmatpush1.bf16.msra.mxu0 0
    %211 = vmatprep.mubr.bf16.mxu0 0
    %212 = vmatmul.mubr.bf16.gmra.mrb[0].mxu0 %v79
    %v213 = vpop.f32.mrb[0].mxu0
    %v214 = vadd.f32 0.0, %v213
    %v215 = vpop.f32.mrb[0].mxu0
    %v216 = vpop.f32.mrb[0].mxu0
    %v217 = vadd.f32 0.0, %v216
    %v218 = vpop.f32.mrb[0].mxu0
    %219 = vmatprep.mubr.bf16.mxu0 0
    %220 = vmatmul.mubr.bf16.gmra.mrb[0].mxu0 %v80
    %v221 = vpop.f32.mrb[0].mxu0
    %v222 = vadd.f32 0.0, %v221
    %v223 = vpop.f32.mrb[0].mxu0
    %v224 = vpop.f32.mrb[0].mxu0
    %v225 = vadd.f32 0.0, %v224
    %v226 = vpop.f32.mrb[0].mxu0
    %227 = vmatprep.mubr.bf16.mxu0 0
    %228 = vmatmul.mubr.bf16.gmra.mrb[0].mxu0 %v81
    %v229 = vpop.f32.mrb[0].mxu0
    %v230 = vadd.f32 0.0, %v229
    %v231 = vpop.f32.mrb[0].mxu0
    %v232 = vpop.f32.mrb[0].mxu0
    %v233 = vadd.f32 0.0, %v232
    %v234 = vpop.f32.mrb[0].mxu0
    %235 = vmatprep.mubr.bf16.mxu0 0
    %236 = vmatmul.mubr.bf16.gmra.mrb[0].mxu0 %v82
    %v237 = vpop.f32.mrb[0].mxu0
    %v238 = vadd.f32 0.0, %v237
    %v239 = vpop.f32.mrb[0].mxu0
    %v240 = vpop.f32.mrb[0].mxu0
    %v241 = vadd.f32 0.0, %v240
    %v242 = vpop.f32.mrb[0].mxu0
    %243 = vmatprep.mubr.bf16.mxu0 0
    %244 = vmatmul.mubr.bf16.gmra.mrb[0].mxu0 %v83
    %v245 = vpop.f32.mrb[0].mxu0
    %v246 = vadd.f32 0.0, %v245
    %v247 = vpop.f32.mrb[0].mxu0
    %v248 = vpop.f32.mrb[0].mxu0
    %v249 = vadd.f32 0.0, %v248
    %v250 = vpop.f32.mrb[0].mxu0
    %251 = vmatprep.mubr.bf16.mxu0 0
    %252 = vmatmul.mubr.bf16.gmra.mrb[0].mxu0 %v84
    %v253 = vpop.f32.mrb[0].mxu0
    %v254 = vadd.f32 0.0, %v253
    %v255 = vpop.f32.mrb[0].mxu0
    %v256 = vpop.f32.mrb[0].mxu0
    %v257 = vadd.f32 0.0, %v256
    %v258 = vpop.f32.mrb[0].mxu0
    %259 = vmatprep.mubr.bf16.mxu0 0
    %260 = vmatmul.mubr.bf16.gmra.mrb[0].mxu0 %v85
    %v261 = vpop.f32.mrb[0].mxu0
    %v262 = vadd.f32 0.0, %v261
    %v263 = vpop.f32.mrb[0].mxu0
    %v264 = vpop.f32.mrb[0].mxu0
    %v265 = vadd.f32 0.0, %v264
    %v266 = vpop.f32.mrb[0].mxu0
    %267 = vmatprep.mubr.bf16.mxu0 0
    %268 = vmatmul.mubr.bf16.gmra.mrb[0].mxu0 %v86
    %v269 = vpop.f32.mrb[0].mxu0
    %v270 = vadd.f32 0.0, %v269
    %v271 = vpop.f32.mrb[0].mxu0
    %v272 = vpop.f32.mrb[0].mxu0
    %v273 = vadd.f32 0.0, %v272
    %v274 = vpop.f32.mrb[0].mxu0
    %275 = vdwg.mxu0
    %277 = vset.pattern.permute.xlu0 0
    %278 = vperm.xlu0 %277, %v99
    %v279 = vpop.permute.xlu0 %278
    %282 = vset.pattern.permute.xlu0 0
    %283 = vperm.xlu0 %282, %v100
    %v284 = vpop.permute.xlu0 %283
    %287 = vset.pattern.permute.xlu0 0
    %288 = vperm.xlu0 %287, %v101
    %v289 = vpop.permute.xlu0 %288
    %292 = vset.pattern.permute.xlu0 0
    %293 = vperm.xlu0 %292, %v102
    %v294 = vpop.permute.xlu0 %293
    %297 = vset.pattern.permute.xlu0 0
    %298 = vperm.xlu0 %297, %v103
    %v299 = vpop.permute.xlu0 %298
    %302 = vset.pattern.permute.xlu0 0
    %303 = vperm.xlu0 %302, %v104
    %v304 = vpop.permute.xlu0 %303
    %307 = vset.pattern.permute.xlu0 0
    %308 = vperm.xlu0 %307, %v105
    %v309 = vpop.permute.xlu0 %308
    %312 = vset.pattern.permute.xlu0 0
    %313 = vperm.xlu0 %312, %v106
    %v314 = vpop.permute.xlu0 %313
    %317 = vset.pattern.permute.xlu0 0
    %318 = vperm.xlu0 %317, %v107
    %v319 = vpop.permute.xlu0 %318
    %322 = vset.pattern.permute.xlu0 0
    %323 = vperm.xlu0 %322, %v108
    %v324 = vpop.permute.xlu0 %323
    %327 = vset.pattern.permute.xlu0 0
    %328 = vperm.xlu0 %327, %v109
    %v329 = vpop.permute.xlu0 %328
    %332 = vset.pattern.permute.xlu0 0
    %333 = vperm.xlu0 %332, %v110
    %v334 = vpop.permute.xlu0 %333
    %337 = vset.pattern.permute.xlu0 0
    %338 = vperm.xlu0 %337, %v111
    %v339 = vpop.permute.xlu0 %338
    %342 = vset.pattern.permute.xlu0 0
    %343 = vperm.xlu0 %342, %v112
    %v344 = vpop.permute.xlu0 %343
    %347 = vset.pattern.permute.xlu0 0
    %348 = vperm.xlu0 %347, %v113
    %v349 = vpop.permute.xlu0 %348
    %352 = vset.pattern.permute.xlu0 0
    %353 = vperm.xlu0 %352, %v114
    %v354 = vpop.permute.xlu0 %353
    %v356 = vmul.f32 %v279, %v214
    %v357 = vmul.f32 %v284, %v217
    %v358 = vmul.f32 %v289, %v222
    %v359 = vmul.f32 %v294, %v225
    %v360 = vmul.f32 %v299, %v230
    %v361 = vmul.f32 %v304, %v233
    %v362 = vmul.f32 %v309, %v238
    %v363 = vmul.f32 %v314, %v241
    %v364 = vmul.f32 %v319, %v246
    %v365 = vmul.f32 %v324, %v249
    %v366 = vmul.f32 %v329, %v254
    %v367 = vmul.f32 %v334, %v257
    %v368 = vmul.f32 %v339, %v262
    %v369 = vmul.f32 %v344, %v265
    %v370 = vmul.f32 %v349, %v270
    %v371 = vmul.f32 %v354, %v273
    %v372 = vld [vmem:[%s3] sm:$0xff]
    %v373 = vld [vmem:[%s3 + $0x8] sm:$0xff]
    %v374 = vld [vmem:[%s3 + $0x10] sm:$0xff]
    %v375 = vld [vmem:[%s3 + $0x18] sm:$0xff]
    %v376 = vld [vmem:[%s3 + $0x20] sm:$0xff]
    %v377 = vld [vmem:[%s3 + $0x28] sm:$0xff]
    %v378 = vld [vmem:[%s3 + $0x30] sm:$0xff]
    %v379 = vld [vmem:[%s3 + $0x38] sm:$0xff]
    %v380 = vld [vmem:[%s3 + $0x40] sm:$0xff]
    %v381 = vld [vmem:[%s3 + $0x48] sm:$0xff]
    %v382 = vld [vmem:[%s3 + $0x50] sm:$0xff]
    %v383 = vld [vmem:[%s3 + $0x58] sm:$0xff]
    %v384 = vld [vmem:[%s3 + $0x60] sm:$0xff]
    %v385 = vld [vmem:[%s3 + $0x68] sm:$0xff]
    %v386 = vld [vmem:[%s3 + $0x70] sm:$0xff]
    %v387 = vld [vmem:[%s3 + $0x78] sm:$0xff]
    %v388 = vld [vmem:[%s5] sm:$0xf]
    %v389 = vld [vmem:[%s5 + $0x4] sm:$0xf]
    %v390 = vld [vmem:[%s5 + $0x8] sm:$0xf]
    %v391 = vld [vmem:[%s5 + $0xc] sm:$0xf]
    %v392 = vld [vmem:[%s5 + $0x10] sm:$0xf]
    %v393 = vld [vmem:[%s5 + $0x14] sm:$0xf]
    %v394 = vld [vmem:[%s5 + $0x18] sm:$0xf]
    %v395 = vld [vmem:[%s5 + $0x1c] sm:$0xf]
    %v396 = vld [vmem:[%s5 + $0x20] sm:$0xf]
    %v397 = vld [vmem:[%s5 + $0x24] sm:$0xf]
    %v398 = vld [vmem:[%s5 + $0x28] sm:$0xf]
    %v399 = vld [vmem:[%s5 + $0x2c] sm:$0xf]
    %v400 = vld [vmem:[%s5 + $0x30] sm:$0xf]
    %v401 = vld [vmem:[%s5 + $0x34] sm:$0xf]
    %v402 = vld [vmem:[%s5 + $0x38] sm:$0xf]
    %v403 = vld [vmem:[%s5 + $0x3c] sm:$0xf]
    %v420 = vunpack.c.l.b16 %v388
    %v421 = vunpack.c.l.b16 %v389
    %v422 = vunpack.c.l.b16 %v390
    %v423 = vunpack.c.l.b16 %v391
    %v424 = vunpack.c.l.b16 %v392
    %v425 = vunpack.c.l.b16 %v393
    %v426 = vunpack.c.l.b16 %v394
    %v427 = vunpack.c.l.b16 %v395
    %v428 = vunpack.c.l.b16 %v396
    %v429 = vunpack.c.l.b16 %v397
    %v430 = vunpack.c.l.b16 %v398
    %v431 = vunpack.c.l.b16 %v399
    %v432 = vunpack.c.l.b16 %v400
    %v433 = vunpack.c.l.b16 %v401
    %v434 = vunpack.c.l.b16 %v402
    %v435 = vunpack.c.l.b16 %v403
    %v436 = vpack.c.b16 %v421, %v420
    %v437 = vpack.c.b16 %v423, %v422
    %v438 = vpack.c.b16 %v425, %v424
    %v439 = vpack.c.b16 %v427, %v426
    %v440 = vpack.c.b16 %v429, %v428
    %v441 = vpack.c.b16 %v431, %v430
    %v442 = vpack.c.b16 %v433, %v432
    %v443 = vpack.c.b16 %v435, %v434
    %452 = vmatprep.subr.bf16.mxu0 0
    %453 = vmatpush1.bf16.msra.mxu0 %v436
    %454 = vmatprep.subr.bf16.mxu0 0
    %455 = vmatpush1.bf16.msra.mxu0 %v437
    %456 = vmatprep.subr.bf16.mxu0 0
    %457 = vmatpush1.bf16.msra.mxu0 %v438
    %458 = vmatprep.subr.bf16.mxu0 0
    %459 = vmatpush1.bf16.msra.mxu0 %v439
    %460 = vmatprep.subr.bf16.mxu0 0
    %461 = vmatpush1.bf16.msra.mxu0 %v440
    %462 = vmatprep.subr.bf16.mxu0 0
    %463 = vmatpush1.bf16.msra.mxu0 %v441
    %464 = vmatprep.subr.bf16.mxu0 0
    %465 = vmatpush1.bf16.msra.mxu0 %v442
    %466 = vmatprep.subr.bf16.mxu0 0
    %467 = vmatpush1.bf16.msra.mxu0 %v443
    %468 = vmatprep.subr.bf16.mxu0 0
    %469 = vmatpush1.bf16.msra.mxu0 0
    %470 = vmatprep.subr.bf16.mxu0 0
    %471 = vmatpush1.bf16.msra.mxu0 0
    %472 = vmatprep.subr.bf16.mxu0 0
    %473 = vmatpush1.bf16.msra.mxu0 0
    %474 = vmatprep.subr.bf16.mxu0 0
    %475 = vmatpush1.bf16.msra.mxu0 0
    %476 = vmatprep.subr.bf16.mxu0 0
    %477 = vmatpush1.bf16.msra.mxu0 0
    %478 = vmatprep.subr.bf16.mxu0 0
    %479 = vmatpush1.bf16.msra.mxu0 0
    %480 = vmatprep.subr.bf16.mxu0 0
    %481 = vmatpush1.bf16.msra.mxu0 0
    %482 = vmatprep.subr.bf16.mxu0 0
    %483 = vmatpush1.bf16.msra.mxu0 0
    %484 = vmatprep.mubr.bf16.mxu0 0
    %485 = vmatmul.mubr.bf16.gmra.mrb[0].mxu0 %v91
    %v486 = vpop.f32.mrb[0].mxu0
    %v487 = vadd.f32 0.0, %v486
    %v488 = vpop.f32.mrb[0].mxu0
    %v489 = vpop.f32.mrb[0].mxu0
    %v490 = vadd.f32 0.0, %v489
    %v491 = vpop.f32.mrb[0].mxu0
    %492 = vmatprep.mubr.bf16.mxu0 0
    %493 = vmatmul.mubr.bf16.gmra.mrb[0].mxu0 %v92
    %v494 = vpop.f32.mrb[0].mxu0
    %v495 = vadd.f32 0.0, %v494
    %v496 = vpop.f32.mrb[0].mxu0
    %v497 = vpop.f32.mrb[0].mxu0
    %v498 = vadd.f32 0.0, %v497
    %v499 = vpop.f32.mrb[0].mxu0
    %500 = vmatprep.mubr.bf16.mxu0 0
    %501 = vmatmul.mubr.bf16.gmra.mrb[0].mxu0 %v93
    %v502 = vpop.f32.mrb[0].mxu0
    %v503 = vadd.f32 0.0, %v502
    %v504 = vpop.f32.mrb[0].mxu0
    %v505 = vpop.f32.mrb[0].mxu0
    %v506 = vadd.f32 0.0, %v505
    %v507 = vpop.f32.mrb[0].mxu0
    %508 = vmatprep.mubr.bf16.mxu0 0
    %509 = vmatmul.mubr.bf16.gmra.mrb[0].mxu0 %v94
    %v510 = vpop.f32.mrb[0].mxu0
    %v511 = vadd.f32 0.0, %v510
    %v512 = vpop.f32.mrb[0].mxu0
    %v513 = vpop.f32.mrb[0].mxu0
    %v514 = vadd.f32 0.0, %v513
    %v515 = vpop.f32.mrb[0].mxu0
    %516 = vmatprep.mubr.bf16.mxu0 0
    %517 = vmatmul.mubr.bf16.gmra.mrb[0].mxu0 %v95
    %v518 = vpop.f32.mrb[0].mxu0
    %v519 = vadd.f32 0.0, %v518
    %v520 = vpop.f32.mrb[0].mxu0
    %v521 = vpop.f32.mrb[0].mxu0
    %v522 = vadd.f32 0.0, %v521
    %v523 = vpop.f32.mrb[0].mxu0
    %524 = vmatprep.mubr.bf16.mxu0 0
    %525 = vmatmul.mubr.bf16.gmra.mrb[0].mxu0 %v96
    %v526 = vpop.f32.mrb[0].mxu0
    %v527 = vadd.f32 0.0, %v526
    %v528 = vpop.f32.mrb[0].mxu0
    %v529 = vpop.f32.mrb[0].mxu0
    %v530 = vadd.f32 0.0, %v529
    %v531 = vpop.f32.mrb[0].mxu0
    %532 = vmatprep.mubr.bf16.mxu0 0
    %533 = vmatmul.mubr.bf16.gmra.mrb[0].mxu0 %v97
    %v534 = vpop.f32.mrb[0].mxu0
    %v535 = vadd.f32 0.0, %v534
    %v536 = vpop.f32.mrb[0].mxu0
    %v537 = vpop.f32.mrb[0].mxu0
    %v538 = vadd.f32 0.0, %v537
    %v539 = vpop.f32.mrb[0].mxu0
    %540 = vmatprep.mubr.bf16.mxu0 0
    %541 = vmatmul.mubr.bf16.gmra.mrb[0].mxu0 %v98
    %v542 = vpop.f32.mrb[0].mxu0
    %v543 = vadd.f32 0.0, %v542
    %v544 = vpop.f32.mrb[0].mxu0
    %v545 = vpop.f32.mrb[0].mxu0
    %v546 = vadd.f32 0.0, %v545
    %v547 = vpop.f32.mrb[0].mxu0
    %548 = vdwg.mxu0
    %550 = vset.pattern.permute.xlu0 0
    %551 = vperm.xlu0 %550, %v372
    %v552 = vpop.permute.xlu0 %551
    %555 = vset.pattern.permute.xlu0 0
    %556 = vperm.xlu0 %555, %v373
    %v557 = vpop.permute.xlu0 %556
    %560 = vset.pattern.permute.xlu0 0
    %561 = vperm.xlu0 %560, %v374
    %v562 = vpop.permute.xlu0 %561
    %565 = vset.pattern.permute.xlu0 0
    %566 = vperm.xlu0 %565, %v375
    %v567 = vpop.permute.xlu0 %566
    %570 = vset.pattern.permute.xlu0 0
    %571 = vperm.xlu0 %570, %v376
    %v572 = vpop.permute.xlu0 %571
    %575 = vset.pattern.permute.xlu0 0
    %576 = vperm.xlu0 %575, %v377
    %v577 = vpop.permute.xlu0 %576
    %580 = vset.pattern.permute.xlu0 0
    %581 = vperm.xlu0 %580, %v378
    %v582 = vpop.permute.xlu0 %581
    %585 = vset.pattern.permute.xlu0 0
    %586 = vperm.xlu0 %585, %v379
    %v587 = vpop.permute.xlu0 %586
    %590 = vset.pattern.permute.xlu0 0
    %591 = vperm.xlu0 %590, %v380
    %v592 = vpop.permute.xlu0 %591
    %595 = vset.pattern.permute.xlu0 0
    %596 = vperm.xlu0 %595, %v381
    %v597 = vpop.permute.xlu0 %596
    %600 = vset.pattern.permute.xlu0 0
    %601 = vperm.xlu0 %600, %v382
    %v602 = vpop.permute.xlu0 %601
    %605 = vset.pattern.permute.xlu0 0
    %606 = vperm.xlu0 %605, %v383
    %v607 = vpop.permute.xlu0 %606
    %610 = vset.pattern.permute.xlu0 0
    %611 = vperm.xlu0 %610, %v384
    %v612 = vpop.permute.xlu0 %611
    %615 = vset.pattern.permute.xlu0 0
    %616 = vperm.xlu0 %615, %v385
    %v617 = vpop.permute.xlu0 %616
    %620 = vset.pattern.permute.xlu0 0
    %621 = vperm.xlu0 %620, %v386
    %v622 = vpop.permute.xlu0 %621
    %625 = vset.pattern.permute.xlu0 0
    %626 = vperm.xlu0 %625, %v387
    %v627 = vpop.permute.xlu0 %626
    %v629 = vmul.f32 %v552, %v487
    %v630 = vmul.f32 %v557, %v490
    %v631 = vmul.f32 %v562, %v495
    %v632 = vmul.f32 %v567, %v498
    %v633 = vmul.f32 %v572, %v503
    %v634 = vmul.f32 %v577, %v506
    %v635 = vmul.f32 %v582, %v511
    %v636 = vmul.f32 %v587, %v514
    %v637 = vmul.f32 %v592, %v519
    %v638 = vmul.f32 %v597, %v522
    %v639 = vmul.f32 %v602, %v527
    %v640 = vmul.f32 %v607, %v530
    %v641 = vmul.f32 %v612, %v535
    %v642 = vmul.f32 %v617, %v538
    %v643 = vmul.f32 %v622, %v543
    %v644 = vmul.f32 %v627, %v546
    %v645 = vpack.c.bf16 %v357, %v356
    %v646 = vpack.c.bf16 %v630, %v629
    %v647 = vpack.c.bf16 %v359, %v358
    %v648 = vpack.c.bf16 %v632, %v631
    %v649 = vpack.c.bf16 %v361, %v360
    %v650 = vpack.c.bf16 %v634, %v633
    %v651 = vpack.c.bf16 %v363, %v362
    %v652 = vpack.c.bf16 %v636, %v635
    %v653 = vpack.c.bf16 %v365, %v364
    %v654 = vpack.c.bf16 %v638, %v637
    %v655 = vpack.c.bf16 %v367, %v366
    %v656 = vpack.c.bf16 %v640, %v639
    %v657 = vpack.c.bf16 %v369, %v368
    %v658 = vpack.c.bf16 %v642, %v641
    %v659 = vpack.c.bf16 %v371, %v370
    %v660 = vpack.c.bf16 %v644, %v643
    %v661 = vld [vmem:[%s6] sm:$0xf]
    %v662 = vld [vmem:[%s6 + $0x4] sm:$0xf]
    %v663 = vld [vmem:[%s6 + $0x8] sm:$0xf]
    %v664 = vld [vmem:[%s6 + $0xc] sm:$0xf]
    %v665 = vld [vmem:[%s6 + $0x10] sm:$0xf]
    %v666 = vld [vmem:[%s6 + $0x14] sm:$0xf]
    %v667 = vld [vmem:[%s6 + $0x18] sm:$0xf]
    %v668 = vld [vmem:[%s6 + $0x1c] sm:$0xf]
    %v669 = vld [vmem:[%s6 + $0x20] sm:$0xf]
    %v670 = vld [vmem:[%s6 + $0x24] sm:$0xf]
    %v671 = vld [vmem:[%s6 + $0x28] sm:$0xf]
    %v672 = vld [vmem:[%s6 + $0x2c] sm:$0xf]
    %v673 = vld [vmem:[%s6 + $0x30] sm:$0xf]
    %v674 = vld [vmem:[%s6 + $0x34] sm:$0xf]
    %v675 = vld [vmem:[%s6 + $0x38] sm:$0xf]
    %v676 = vld [vmem:[%s6 + $0x3c] sm:$0xf]
    %v677 = vld [vmem:[%s6 + $0x40] sm:$0xf]
    %v678 = vld [vmem:[%s6 + $0x44] sm:$0xf]
    %v679 = vld [vmem:[%s6 + $0x48] sm:$0xf]
    %v680 = vld [vmem:[%s6 + $0x4c] sm:$0xf]
    %v681 = vld [vmem:[%s6 + $0x50] sm:$0xf]
    %v682 = vld [vmem:[%s6 + $0x54] sm:$0xf]
    %v683 = vld [vmem:[%s6 + $0x58] sm:$0xf]
    %v684 = vld [vmem:[%s6 + $0x5c] sm:$0xf]
    %v685 = vld [vmem:[%s6 + $0x60] sm:$0xf]
    %v686 = vld [vmem:[%s6 + $0x64] sm:$0xf]
    %v687 = vld [vmem:[%s6 + $0x68] sm:$0xf]
    %v688 = vld [vmem:[%s6 + $0x6c] sm:$0xf]
    %v689 = vld [vmem:[%s6 + $0x70] sm:$0xf]
    %v690 = vld [vmem:[%s6 + $0x74] sm:$0xf]
    %v691 = vld [vmem:[%s6 + $0x78] sm:$0xf]
    %v692 = vld [vmem:[%s6 + $0x7c] sm:$0xf]
    %v693 = vld [vmem:[%s7] sm:$0x1]
    %v695 = vlaneseq
    %v696 = vshrl.u32 %v695, 7
    %v697 = vsub.s32 0, %v696
    %v698 = vrot.slane %v693, %v697
    %v732 = vunpack.c.l.b16 %v661
    %v733 = vunpack.c.l.b16 %v662
    %v734 = vunpack.c.l.b16 %v663
    %v735 = vunpack.c.l.b16 %v664
    %v736 = vunpack.c.l.b16 %v665
    %v737 = vunpack.c.l.b16 %v666
    %v738 = vunpack.c.l.b16 %v667
    %v739 = vunpack.c.l.b16 %v668
    %v740 = vunpack.c.l.b16 %v669
    %v741 = vunpack.c.l.b16 %v670
    %v742 = vunpack.c.l.b16 %v671
    %v743 = vunpack.c.l.b16 %v672
    %v744 = vunpack.c.l.b16 %v673
    %v745 = vunpack.c.l.b16 %v674
    %v746 = vunpack.c.l.b16 %v675
    %v747 = vunpack.c.l.b16 %v676
    %v748 = vunpack.c.l.b16 %v677
    %v749 = vunpack.c.l.b16 %v678
    %v750 = vunpack.c.l.b16 %v679
    %v751 = vunpack.c.l.b16 %v680
    %v752 = vunpack.c.l.b16 %v681
    %v753 = vunpack.c.l.b16 %v682
    %v754 = vunpack.c.l.b16 %v683
    %v755 = vunpack.c.l.b16 %v684
    %v756 = vunpack.c.l.b16 %v685
    %v757 = vunpack.c.l.b16 %v686
    %v758 = vunpack.c.l.b16 %v687
    %v759 = vunpack.c.l.b16 %v688
    %v760 = vunpack.c.l.b16 %v689
    %v761 = vunpack.c.l.b16 %v690
    %v762 = vunpack.c.l.b16 %v691
    %v763 = vunpack.c.l.b16 %v692
    %v764 = vpack.c.b16 %v733, %v732
    %v765 = vpack.c.b16 %v735, %v734
    %v766 = vpack.c.b16 %v737, %v736
    %v767 = vpack.c.b16 %v739, %v738
    %v768 = vpack.c.b16 %v741, %v740
    %v769 = vpack.c.b16 %v743, %v742
    %v770 = vpack.c.b16 %v745, %v744
    %v771 = vpack.c.b16 %v747, %v746
    %v772 = vpack.c.b16 %v749, %v748
    %v773 = vpack.c.b16 %v751, %v750
    %v774 = vpack.c.b16 %v753, %v752
    %v775 = vpack.c.b16 %v755, %v754
    %v776 = vpack.c.b16 %v757, %v756
    %v777 = vpack.c.b16 %v759, %v758
    %v778 = vpack.c.b16 %v761, %v760
    %v779 = vpack.c.b16 %v763, %v762
    %796 = vmatprep.subr.bf16.mxu0 0
    %797 = vmatpush1.bf16.msra.mxu0 %v764
    %798 = vmatprep.subr.bf16.mxu0 0
    %799 = vmatpush1.bf16.msra.mxu0 %v765
    %800 = vmatprep.subr.bf16.mxu0 0
    %801 = vmatpush1.bf16.msra.mxu0 %v766
    %802 = vmatprep.subr.bf16.mxu0 0
    %803 = vmatpush1.bf16.msra.mxu0 %v767
    %804 = vmatprep.subr.bf16.mxu0 0
    %805 = vmatpush1.bf16.msra.mxu0 %v768
    %806 = vmatprep.subr.bf16.mxu0 0
    %807 = vmatpush1.bf16.msra.mxu0 %v769
    %808 = vmatprep.subr.bf16.mxu0 0
    %809 = vmatpush1.bf16.msra.mxu0 %v770
    %810 = vmatprep.subr.bf16.mxu0 0
    %811 = vmatpush1.bf16.msra.mxu0 %v771
    %812 = vmatprep.subr.bf16.mxu0 0
    %813 = vmatpush1.bf16.msra.mxu0 %v772
    %814 = vmatprep.subr.bf16.mxu0 0
    %815 = vmatpush1.bf16.msra.mxu0 %v773
    %816 = vmatprep.subr.bf16.mxu0 0
    %817 = vmatpush1.bf16.msra.mxu0 %v774
    %818 = vmatprep.subr.bf16.mxu0 0
    %819 = vmatpush1.bf16.msra.mxu0 %v775
    %820 = vmatprep.subr.bf16.mxu0 0
    %821 = vmatpush1.bf16.msra.mxu0 %v776
    %822 = vmatprep.subr.bf16.mxu0 0
    %823 = vmatpush1.bf16.msra.mxu0 %v777
    %824 = vmatprep.subr.bf16.mxu0 0
    %825 = vmatpush1.bf16.msra.mxu0 %v778
    %826 = vmatprep.subr.bf16.mxu0 0
    %827 = vmatpush1.bf16.msra.mxu0 %v779
    %828 = vmatprep.mubr.bf16.mxu0 %v646
    %829 = vmatmul.mubr.bf16.gmra.mrb[0].mxu0 %v645
    %v830 = vpop.f32.mrb[0].mxu0
    %v831 = vadd.f32 %v698, %v830
    %v832 = vpop.f32.mrb[0].mxu0
    %v833 = vpop.f32.mrb[0].mxu0
    %v834 = vadd.f32 %v698, %v833
    %v835 = vpop.f32.mrb[0].mxu0
    %836 = vmatprep.mubr.bf16.mxu0 %v648
    %837 = vmatmul.mubr.bf16.gmra.mrb[0].mxu0 %v647
    %v838 = vpop.f32.mrb[0].mxu0
    %v839 = vadd.f32 %v698, %v838
    %v840 = vpop.f32.mrb[0].mxu0
    %v841 = vpop.f32.mrb[0].mxu0
    %v842 = vadd.f32 %v698, %v841
    %v843 = vpop.f32.mrb[0].mxu0
    %844 = vmatprep.mubr.bf16.mxu0 %v650
    %845 = vmatmul.mubr.bf16.gmra.mrb[0].mxu0 %v649
    %v846 = vpop.f32.mrb[0].mxu0
    %v847 = vadd.f32 %v698, %v846
    %v848 = vpop.f32.mrb[0].mxu0
    %v849 = vpop.f32.mrb[0].mxu0
    %v850 = vadd.f32 %v698, %v849
    %v851 = vpop.f32.mrb[0].mxu0
    %852 = vmatprep.mubr.bf16.mxu0 %v652
    %853 = vmatmul.mubr.bf16.gmra.mrb[0].mxu0 %v651
    %v854 = vpop.f32.mrb[0].mxu0
    %v855 = vadd.f32 %v698, %v854
    %v856 = vpop.f32.mrb[0].mxu0
    %v857 = vpop.f32.mrb[0].mxu0
    %v858 = vadd.f32 %v698, %v857
    %v859 = vpop.f32.mrb[0].mxu0
    %860 = vmatprep.mubr.bf16.mxu0 %v654
    %861 = vmatmul.mubr.bf16.gmra.mrb[0].mxu0 %v653
    %v862 = vpop.f32.mrb[0].mxu0
    %v863 = vadd.f32 %v698, %v862
    %v864 = vpop.f32.mrb[0].mxu0
    %v865 = vpop.f32.mrb[0].mxu0
    %v866 = vadd.f32 %v698, %v865
    %v867 = vpop.f32.mrb[0].mxu0
    %868 = vmatprep.mubr.bf16.mxu0 %v656
    %869 = vmatmul.mubr.bf16.gmra.mrb[0].mxu0 %v655
    %v870 = vpop.f32.mrb[0].mxu0
    %v871 = vadd.f32 %v698, %v870
    %v872 = vpop.f32.mrb[0].mxu0
    %v873 = vpop.f32.mrb[0].mxu0
    %v874 = vadd.f32 %v698, %v873
    %v875 = vpop.f32.mrb[0].mxu0
    %876 = vmatprep.mubr.bf16.mxu0 %v658
    %877 = vmatmul.mubr.bf16.gmra.mrb[0].mxu0 %v657
    %v878 = vpop.f32.mrb[0].mxu0
    %v879 = vadd.f32 %v698, %v878
    %v880 = vpop.f32.mrb[0].mxu0
    %v881 = vpop.f32.mrb[0].mxu0
    %v882 = vadd.f32 %v698, %v881
    %v883 = vpop.f32.mrb[0].mxu0
    %884 = vmatprep.mubr.bf16.mxu0 %v660
    %885 = vmatmul.mubr.bf16.gmra.mrb[0].mxu0 %v659
    %v886 = vpop.f32.mrb[0].mxu0
    %v887 = vadd.f32 %v698, %v886
    %v888 = vpop.f32.mrb[0].mxu0
    %v889 = vpop.f32.mrb[0].mxu0
    %v890 = vadd.f32 %v698, %v889
    %v891 = vpop.f32.mrb[0].mxu0
    %892 = vdwg.mxu0
    %v893 = vmax.f32 %v831, 0.0
    %v894 = vmax.f32 %v834, 0.0
    %v895 = vmax.f32 %v839, 0.0
    %v896 = vmax.f32 %v842, 0.0
    %v897 = vmax.f32 %v847, 0.0
    %v898 = vmax.f32 %v850, 0.0
    %v899 = vmax.f32 %v855, 0.0
    %v900 = vmax.f32 %v858, 0.0
    %v901 = vmax.f32 %v863, 0.0
    %v902 = vmax.f32 %v866, 0.0
    %v903 = vmax.f32 %v871, 0.0
    %v904 = vmax.f32 %v874, 0.0
    %v905 = vmax.f32 %v879, 0.0
    %v906 = vmax.f32 %v882, 0.0
    %v907 = vmax.f32 %v887, 0.0
    %v908 = vmax.f32 %v890, 0.0
    %v909 = vpack.c.bf16 %v894, %v893
    %v910 = vpack.c.bf16 %v896, %v895
    %v911 = vpack.c.bf16 %v898, %v897
    %v912 = vpack.c.bf16 %v900, %v899
    %v913 = vpack.c.bf16 %v902, %v901
    %v914 = vpack.c.bf16 %v904, %v903
    %v915 = vpack.c.bf16 %v906, %v905
    %v916 = vpack.c.bf16 %v908, %v907
    %v917 = vld [vmem:[#allocation7] sm:$0xf]
    %v918 = vld [vmem:[#allocation7 + $0x4] sm:$0xf]
    %v919 = vld [vmem:[#allocation7 + $0x8] sm:$0xf]
    %v920 = vld [vmem:[#allocation7 + $0xc] sm:$0xf]
    %v921 = vld [vmem:[#allocation7 + $0x10] sm:$0xf]
    %v922 = vld [vmem:[#allocation7 + $0x14] sm:$0xf]
    %v923 = vld [vmem:[#allocation7 + $0x18] sm:$0xf]
    %v924 = vld [vmem:[#allocation7 + $0x1c] sm:$0xf]
    %v925 = vld [vmem:[#allocation7 + $0x20] sm:$0xf]
    %v926 = vld [vmem:[#allocation7 + $0x24] sm:$0xf]
    %v927 = vld [vmem:[#allocation7 + $0x28] sm:$0xf]
    %v928 = vld [vmem:[#allocation7 + $0x2c] sm:$0xf]
    %v929 = vld [vmem:[#allocation7 + $0x30] sm:$0xf]
    %v930 = vld [vmem:[#allocation7 + $0x34] sm:$0xf]
    %v931 = vld [vmem:[#allocation7 + $0x38] sm:$0xf]
    %v932 = vld [vmem:[#allocation7 + $0x3c] sm:$0xf]
    %v949 = vunpack.c.l.b16 %v917
    %v950 = vunpack.c.l.b16 %v918
    %v951 = vunpack.c.l.b16 %v919
    %v952 = vunpack.c.l.b16 %v920
    %v953 = vunpack.c.l.b16 %v921
    %v954 = vunpack.c.l.b16 %v922
    %v955 = vunpack.c.l.b16 %v923
    %v956 = vunpack.c.l.b16 %v924
    %v957 = vunpack.c.l.b16 %v925
    %v958 = vunpack.c.l.b16 %v926
    %v959 = vunpack.c.l.b16 %v927
    %v960 = vunpack.c.l.b16 %v928
    %v961 = vunpack.c.l.b16 %v929
    %v962 = vunpack.c.l.b16 %v930
    %v963 = vunpack.c.l.b16 %v931
    %v964 = vunpack.c.l.b16 %v932
    %v965 = vpack.c.b16 %v950, %v949
    %v966 = vpack.c.b16 %v952, %v951
    %v967 = vpack.c.b16 %v954, %v953
    %v968 = vpack.c.b16 %v956, %v955
    %v969 = vpack.c.b16 %v958, %v957
    %v970 = vpack.c.b16 %v960, %v959
    %v971 = vpack.c.b16 %v962, %v961
    %v972 = vpack.c.b16 %v964, %v963
    %981 = vmatprep.subr.bf16.mxu0 0
    %982 = vmatpush1.bf16.msra.mxu0 %v965
    %983 = vmatprep.subr.bf16.mxu0 0
    %984 = vmatpush1.bf16.msra.mxu0 %v966
    %985 = vmatprep.subr.bf16.mxu0 0
    %986 = vmatpush1.bf16.msra.mxu0 %v967
    %987 = vmatprep.subr.bf16.mxu0 0
    %988 = vmatpush1.bf16.msra.mxu0 %v968
    %989 = vmatprep.subr.bf16.mxu0 0
    %990 = vmatpush1.bf16.msra.mxu0 %v969
    %991 = vmatprep.subr.bf16.mxu0 0
    %992 = vmatpush1.bf16.msra.mxu0 %v970
    %993 = vmatprep.subr.bf16.mxu0 0
    %994 = vmatpush1.bf16.msra.mxu0 %v971
    %995 = vmatprep.subr.bf16.mxu0 0
    %996 = vmatpush1.bf16.msra.mxu0 %v972
    %997 = vmatprep.subr.bf16.mxu0 0
    %998 = vmatpush1.bf16.msra.mxu0 0
    %999 = vmatprep.subr.bf16.mxu0 0
    %1000 = vmatpush1.bf16.msra.mxu0 0
    %1001 = vmatprep.subr.bf16.mxu0 0
    %1002 = vmatpush1.bf16.msra.mxu0 0
    %1003 = vmatprep.subr.bf16.mxu0 0
    %1004 = vmatpush1.bf16.msra.mxu0 0
    %1005 = vmatprep.subr.bf16.mxu0 0
    %1006 = vmatpush1.bf16.msra.mxu0 0
    %1007 = vmatprep.subr.bf16.mxu0 0
    %1008 = vmatpush1.bf16.msra.mxu0 0
    %1009 = vmatprep.subr.bf16.mxu0 0
    %1010 = vmatpush1.bf16.msra.mxu0 0
    %1011 = vmatprep.subr.bf16.mxu0 0
    %1012 = vmatpush1.bf16.msra.mxu0 0
    %1013 = vmatprep.mubr.bf16.mxu0 0
    %1014 = vmatmul.mubr.bf16.gmra.mrb[0].mxu0 %v909
    %v1015 = vpop.f32.mrb[0].mxu0
    %v1016 = vadd.f32 0.0, %v1015
    %v1017 = vpop.f32.mrb[0].mxu0
    %v1018 = vpop.f32.mrb[0].mxu0
    %v1019 = vadd.f32 0.0, %v1018
    %v1020 = vpop.f32.mrb[0].mxu0
    %1021 = vmatprep.mubr.bf16.mxu0 0
    %1022 = vmatmul.mubr.bf16.gmra.mrb[0].mxu0 %v910
    %v1023 = vpop.f32.mrb[0].mxu0
    %v1024 = vadd.f32 0.0, %v1023
    %v1025 = vpop.f32.mrb[0].mxu0
    %v1026 = vpop.f32.mrb[0].mxu0
    %v1027 = vadd.f32 0.0, %v1026
    %v1028 = vpop.f32.mrb[0].mxu0
    %1029 = vmatprep.mubr.bf16.mxu0 0
    %1030 = vmatmul.mubr.bf16.gmra.mrb[0].mxu0 %v911
    %v1031 = vpop.f32.mrb[0].mxu0
    %v1032 = vadd.f32 0.0, %v1031
    %v1033 = vpop.f32.mrb[0].mxu0
    %v1034 = vpop.f32.mrb[0].mxu0
    %v1035 = vadd.f32 0.0, %v1034
    %v1036 = vpop.f32.mrb[0].mxu0
    %1037 = vmatprep.mubr.bf16.mxu0 0
    %1038 = vmatmul.mubr.bf16.gmra.mrb[0].mxu0 %v912
    %v1039 = vpop.f32.mrb[0].mxu0
    %v1040 = vadd.f32 0.0, %v1039
    %v1041 = vpop.f32.mrb[0].mxu0
    %v1042 = vpop.f32.mrb[0].mxu0
    %v1043 = vadd.f32 0.0, %v1042
    %v1044 = vpop.f32.mrb[0].mxu0
    %1045 = vmatprep.mubr.bf16.mxu0 0
    %1046 = vmatmul.mubr.bf16.gmra.mrb[0].mxu0 %v913
    %v1047 = vpop.f32.mrb[0].mxu0
    %v1048 = vadd.f32 0.0, %v1047
    %v1049 = vpop.f32.mrb[0].mxu0
    %v1050 = vpop.f32.mrb[0].mxu0
    %v1051 = vadd.f32 0.0, %v1050
    %v1052 = vpop.f32.mrb[0].mxu0
    %1053 = vmatprep.mubr.bf16.mxu0 0
    %1054 = vmatmul.mubr.bf16.gmra.mrb[0].mxu0 %v914
    %v1055 = vpop.f32.mrb[0].mxu0
    %v1056 = vadd.f32 0.0, %v1055
    %v1057 = vpop.f32.mrb[0].mxu0
    %v1058 = vpop.f32.mrb[0].mxu0
    %v1059 = vadd.f32 0.0, %v1058
    %v1060 = vpop.f32.mrb[0].mxu0
    %1061 = vmatprep.mubr.bf16.mxu0 0
    %1062 = vmatmul.mubr.bf16.gmra.mrb[0].mxu0 %v915
    %v1063 = vpop.f32.mrb[0].mxu0
    %v1064 = vadd.f32 0.0, %v1063
    %v1065 = vpop.f32.mrb[0].mxu0
    %v1066 = vpop.f32.mrb[0].mxu0
    %v1067 = vadd.f32 0.0, %v1066
    %v1068 = vpop.f32.mrb[0].mxu0
    %1069 = vmatprep.mubr.bf16.mxu0 0
    %1070 = vmatmul.mubr.bf16.gmra.mrb[0].mxu0 %v916
    %v1071 = vpop.f32.mrb[0].mxu0
    %v1072 = vadd.f32 0.0, %v1071
    %v1073 = vpop.f32.mrb[0].mxu0
    %v1074 = vpop.f32.mrb[0].mxu0
    %v1075 = vadd.f32 0.0, %v1074
    %v1076 = vpop.f32.mrb[0].mxu0
    %1077 = vdwg.mxu0
    %v1078 = vmul.f32 %v552, %v1016
    %v1079 = vmul.f32 %v557, %v1019
    %v1080 = vmul.f32 %v562, %v1024
    %v1081 = vmul.f32 %v567, %v1027
    %v1082 = vmul.f32 %v572, %v1032
    %v1083 = vmul.f32 %v577, %v1035
    %v1084 = vmul.f32 %v582, %v1040
    %v1085 = vmul.f32 %v587, %v1043
    %v1086 = vmul.f32 %v592, %v1048
    %v1087 = vmul.f32 %v597, %v1051
    %v1088 = vmul.f32 %v602, %v1056
    %v1089 = vmul.f32 %v607, %v1059
    %v1090 = vmul.f32 %v612, %v1064
    %v1091 = vmul.f32 %v617, %v1067
    %v1092 = vmul.f32 %v622, %v1072
    %v1093 = vmul.f32 %v627, %v1075
    %v1094 = vpack.c.bf16 %v1079, %v1078
    %v1095 = vpack.c.bf16 %v1081, %v1080
    %v1096 = vpack.c.bf16 %v1083, %v1082
    %v1097 = vpack.c.bf16 %v1085, %v1084
    %v1098 = vpack.c.bf16 %v1087, %v1086
    %v1099 = vpack.c.bf16 %v1089, %v1088
    %v1100 = vpack.c.bf16 %v1091, %v1090
    %v1101 = vpack.c.bf16 %v1093, %v1092
    %v1110 = vunpack.c.l.b16 %v1094
    %v1111 = vunpack.c.h.b16 %v1094
    %v1112 = vunpack.c.l.b16 %v1095
    %v1113 = vunpack.c.h.b16 %v1095
    %v1114 = vunpack.c.l.b16 %v1096
    %v1115 = vunpack.c.h.b16 %v1096
    %v1116 = vunpack.c.l.b16 %v1097
    %v1117 = vunpack.c.h.b16 %v1097
    %v1118 = vunpack.c.l.b16 %v1098
    %v1119 = vunpack.c.h.b16 %v1098
    %v1120 = vunpack.c.l.b16 %v1099
    %v1121 = vunpack.c.h.b16 %v1099
    %v1122 = vunpack.c.l.b16 %v1100
    %v1123 = vunpack.c.h.b16 %v1100
    %v1124 = vunpack.c.l.b16 %v1101
    %v1125 = vunpack.c.h.b16 %v1101
    %v1126 = vpack.c.b16 %v1110, %v1110
    %v1127 = vpack.c.b16 %v1111, %v1111
    %v1128 = vpack.c.b16 %v1112, %v1112
    %v1129 = vpack.c.b16 %v1113, %v1113
    %v1130 = vpack.c.b16 %v1114, %v1114
    %v1131 = vpack.c.b16 %v1115, %v1115
    %v1132 = vpack.c.b16 %v1116, %v1116
    %v1133 = vpack.c.b16 %v1117, %v1117
    %v1134 = vpack.c.b16 %v1118, %v1118
    %v1135 = vpack.c.b16 %v1119, %v1119
    %v1136 = vpack.c.b16 %v1120, %v1120
    %v1137 = vpack.c.b16 %v1121, %v1121
    %v1138 = vpack.c.b16 %v1122, %v1122
    %v1139 = vpack.c.b16 %v1123, %v1123
    %v1140 = vpack.c.b16 %v1124, %v1124
    %v1141 = vpack.c.b16 %v1125, %v1125
    %1158 = vst [vmem:[#allocation8] sm:$0xf] %v1126
    %1159 = vst [vmem:[#allocation8 + $0x4] sm:$0xf] %v1127
    %1160 = vst [vmem:[#allocation8 + $0x8] sm:$0xf] %v1128
    %1161 = vst [vmem:[#allocation8 + $0xc] sm:$0xf] %v1129
    %1162 = vst [vmem:[#allocation8 + $0x10] sm:$0xf] %v1130
    %1163 = vst [vmem:[#allocation8 + $0x14] sm:$0xf] %v1131
    %1164 = vst [vmem:[#allocation8 + $0x18] sm:$0xf] %v1132
    %1165 = vst [vmem:[#allocation8 + $0x1c] sm:$0xf] %v1133
    %1166 = vst [vmem:[#allocation8 + $0x20] sm:$0xf] %v1134
    %1167 = vst [vmem:[#allocation8 + $0x24] sm:$0xf] %v1135
    %1168 = vst [vmem:[#allocation8 + $0x28] sm:$0xf] %v1136
    %1169 = vst [vmem:[#allocation8 + $0x2c] sm:$0xf] %v1137
    %1170 = vst [vmem:[#allocation8 + $0x30] sm:$0xf] %v1138
    %1171 = vst [vmem:[#allocation8 + $0x34] sm:$0xf] %v1139
    %1172 = vst [vmem:[#allocation8 + $0x38] sm:$0xf] %v1140
    %1173 = vst [vmem:[#allocation8 + $0x3c] sm:$0xf] %v1141
    // Predicated region
    $region50: #{tpu_custom_call.1} parent=1 // pred_check
      _
    $region51: #{tpu_custom_call.1} parent=1 // pred_check_branch
      %1175 = sbr.rel (0) target = $region53
    $region52: #{tpu_custom_call.1} parent=1 // pred_region
      %s1177 = ssub.s32 1024, 1024
      %1178 = vsyncadd [#allocation4], %s1177
      %s1179 = sshll.u32 [#allocation8], 4
      %s1180 = int_to_ptr.vmem [resolvable:$true] %s1179
      %1185 = dma.vmem_to_hbm [thread:$0]  %s1180, 1024, %s9, [#allocation4], 64, 64, 4
    $region53: #{tpu_custom_call.1} parent=1 // pred_fallthru
      _
    // Predicated region
    $region54: #{tpu_custom_call.1} parent=1 // pred_check
      _
    $region55: #{tpu_custom_call.1} parent=1 // pred_check_branch
      %1187 = sbr.rel (0) target = $region57
    $region56: #{tpu_custom_call.1} parent=1 // pred_region
      %1188 = dma.done [#allocation4], 1024
    $region57: #{tpu_custom_call.1} parent=1 // pred_fallthru
      _
    %1189 = vsyncpa [#allocation3], 1
    %1190 = vsyncpa [#allocation6], 1
    %1191 = vsyncpa [#allocation4], 1

</llo_original>
